<compile_context>
chip_gen: v6e
topology: v6e:2x2x1
jax: 0.10.0
libtpu: 0.0.40
codegen_flags: <defaults>
</compile_context>

<pallas_src>
import functools

import jax
import jax.numpy as jnp
import numpy as np
from jax.experimental import pallas as pl
from jax.experimental.pallas import tpu as pltpu


def _round_up(x, m):
    return (x + m - 1) // m * m


def _vmem_capacity_bytes():
    try:
        return int(pltpu.get_tpu_info().vmem_capacity_bytes)
    except Exception:
        return 64 * 1024 * 1024  # conservative: v7x per-TensorCore VMEM


# ------------------------------ Pallas kernel ------------------------------ #
def _ggru_kernel(x_ref, adj_ref,
                 w_agg_ref, b_agg_ref,              # fused pre-aggregation weight/bias
                 w_x_ref, b_x_ref,                  # fused x-sides of the concat-linears
                 wr_lh_ref, wz_lh_ref, w_nih_ref,   # h-sides
                 w_pr_ref, b_pr_ref,                # proj
                 out_ref,
                 h_acc_ref, deg_ref,                # f32 VMEM scratch
                 *, c_in, c_b, c_pad, tj, cdt):
    bb, n, _ = x_ref.shape
    j = pl.program_id(1)
    nj = pl.num_programs(1)
    mm = functools.partial(jnp.dot, preferred_element_type=jnp.float32)

    @pl.when(j == 0)
    def _init():
        h_acc_ref[...] = jnp.zeros_like(h_acc_ref)

    # --- Stage 1 (per column tile): y[js] = x[js] @ [wr_n | wz_n | w_nh | I] + b ---
    # Recomputing per tile costs exactly the same total FLOPs as computing it once.
    js = pl.multiple_of(j * tj, tj)
    x_tile = x_ref[:, pl.ds(js, tj), :]                        # (bb, Tj, C_in)
    y = mm(x_tile.reshape(bb * tj, c_in), w_agg_ref[...]) + b_agg_ref[...]
    y = y.reshape(bb, tj, 4 * c_b).astype(cdt)

    # --- Stage 2: partial adjacency aggregation + in-kernel degree (column sums) ---
    # adj is stored narrow (int8 0/1) and widened here, in VMEM, right before use.
    adj_f32 = adj_ref[...].astype(jnp.float32)                 # (bb, N, Tj)
    deg_ref[:, pl.ds(js, tj), :] = jnp.sum(adj_f32, axis=1)[:, :, None]
    h_acc_ref[...] += jnp.einsum("bij,bjc->bic", adj_f32.astype(cdt), y,
                                 preferred_element_type=jnp.float32)

    # --- Stages 3+4 (once per batch block, after the last column tile) ---
    @pl.when(j == nj - 1)
    def _finalize():
        inv = 1.0 / (deg_ref[...] + 1.0)                       # exact, (bb, N, 1) f32
        h2 = (h_acc_ref[...] * inv).reshape(bb * n, 4 * c_b)   # f32
        hr    = h2[:, 0 * c_b:1 * c_b].astype(cdt)
        hz    = h2[:, 1 * c_b:2 * c_b].astype(cdt)
        h     = h2[:, 2 * c_b:3 * c_b]                         # kept f32 for r * h
        neigh = h2[:, 3 * c_b:4 * c_b].astype(cdt)

        # Fused x-sides [wz_l_x | w_ni_x | wr_l_x]: slice offsets 0 / C_pad / 2*C_pad
        # are all 128-aligned.
        x2 = x_ref[...].reshape(bb * n, c_in)
        sx = mm(x2, w_x_ref[...]) + b_x_ref[...]               # f32
        sx_z = sx[:, 0 * c_pad:1 * c_pad]
        sx_n = sx[:, 1 * c_pad:2 * c_pad]
        sx_r = sx[:, 2 * c_pad:]

        # Gate math stays in f32; only MXU operands are cast to the compute dtype.
        r = jax.nn.sigmoid(sx_r + mm(hr, wr_lh_ref[...]))      # (bb*N, c_b)
        z = jax.nn.sigmoid(sx_z + mm(hz, wz_lh_ref[...]))      # (bb*N, C_pad)
        rh = (r * h).astype(cdt)
        nn_ = jnp.tanh(sx_n + mm(rh, w_nih_ref[...]))          # (bb*N, C_pad)
        p = mm(neigh, w_pr_ref[...]) + b_pr_ref[...]           # (bb*N, C_pad)

        out2 = (1.0 - z) * nn_ + z * p
        out_ref[...] = out2.reshape(bb, n, c_pad).astype(out_ref.dtype)


# --------------------------- wrapper / weight packing ------------------------ #
PACKED_ORDER = ("w_agg", "b_agg", "w_x", "b_x",
                "wr_lh", "wz_lh", "w_nih", "w_pr", "b_pr")


def _pack_params(params, c_in, c_b, c_pad, w_dtype):
    f32 = jnp.float32

    def pad_cols(w, width):
        return jnp.pad(w, ((0, 0), (0, width - w.shape[1])))

    def pad_rows(w, rows):
        return jnp.pad(w, ((0, rows - w.shape[0]), (0, 0)))

    # Stage-1 fused pre-aggregation weight: x @ [wr_n | wz_n | w_nh | I].
    # Every branch is zero-padded to c_b columns so branch slices are 128-aligned.
    eye = jnp.eye(c_in, dtype=f32)
    w_agg = jnp.concatenate([pad_cols(params["wr_n"], c_b),
                             pad_cols(params["wz_n"], c_b),
                             pad_cols(params["w_nh"], c_b),
                             pad_cols(eye, c_b)], axis=1)
    zb = jnp.zeros((1, c_b), f32)
    b_agg = jnp.concatenate([zb, zb, pad_cols(params["b_nh"].astype(f32), c_b), zb],
                            axis=1)

    # Concat-linears split into x-side (rows [:c_in]) and h-side (rows [c_in:]).
    wr_l_x, wr_l_h = params["wr_l"][:c_in], params["wr_l"][c_in:]
    wz_l_x, wz_l_h = params["wz_l"][:c_in], params["wz_l"][c_in:]
    w_ni_x, w_ni_h = params["w_ni"][:c_in], params["w_ni"][c_in:]

    # x-side fused weight, ordered [wz_l_x | w_ni_x | wr_l_x] (128-aligned slices).
    w_x = jnp.concatenate([pad_cols(wz_l_x, c_pad),
                           pad_cols(w_ni_x, c_pad),
                           pad_cols(wr_l_x, c_b)], axis=1)
    b_x = jnp.concatenate([jnp.zeros((1, c_pad), f32),
                           pad_cols(params["b_ni"].astype(f32), c_pad),
                           jnp.zeros((1, c_b), f32)], axis=1)

    # h-sides: rows padded c_in -> c_b (the aggregated branches carry zero tails).
    wr_lh = pad_rows(pad_cols(wr_l_h, c_b), c_b)
    wz_lh = pad_rows(pad_cols(wz_l_h, c_pad), c_b)
    w_nih = pad_rows(pad_cols(w_ni_h, c_pad), c_b)
    w_pr = pad_rows(pad_cols(params["w_proj"], c_pad), c_b)
    b_pr = pad_cols(params["b_proj"].astype(f32), c_pad)

    return {"w_agg": w_agg.astype(w_dtype), "b_agg": b_agg,
            "w_x": w_x.astype(w_dtype), "b_x": b_x,
            "wr_lh": wr_lh.astype(w_dtype), "wz_lh": wz_lh.astype(w_dtype),
            "w_nih": w_nih.astype(w_dtype), "w_pr": w_pr.astype(w_dtype),
            "b_pr": b_pr}


def _const_spec(shape):
    nd = len(shape)
    # TODO(synk): pipeline_mode=pl.Buffered(1) for these constant-index weights once
    # validated on all target generations (saves one buffer per resident weight).
    return pl.BlockSpec(shape, lambda b, j, _nd=nd: (0,) * _nd)


@functools.partial(
    jax.jit,
    static_argnames=("batch_block", "compute_dtype", "out_dtype",
                     "adj_storage_dtype", "vmem_budget_mb", "return_padded"))
def ggru_forward(x, adj, params, *, batch_block=None,
                 compute_dtype=jnp.bfloat16, out_dtype=None,
                 adj_storage_dtype=jnp.int8, vmem_budget_mb=None,
                 return_padded=False):
    B, N, C_in = x.shape
    C_out = params["w_ni"].shape[1]
    if out_dtype is None:
        out_dtype = compute_dtype

    c_b = max(_round_up(C_in, 128), 128)      # 128-aligned aggregation branch width
    c_pad = max(_round_up(C_out, 128), 128)   # lane-dense output stores

    # Pad N to a sublane multiple so in-kernel (bb,N,c) <-> (bb*N,c) reshapes are free.
    n_extra = (-N) % 8
    if n_extra:
        x = jnp.pad(x, ((0, 0), (0, n_extra), (0, 0)))
        adj = jnp.pad(adj, ((0, 0), (0, n_extra), (0, n_extra)))
    Np = N + n_extra

    # Narrow adjacency storage.  NOTE: int8 (default) requires a 0/1 (unweighted)
    # adjacency; pass adj_storage_dtype=jnp.float32 for weighted graphs.
    # TODO(synk): fp8 (e4m3) storage on v7x to feed the MXU without the bf16 widen.
    if adj.dtype != np.dtype(adj_storage_dtype):
        adj = adj.astype(adj_storage_dtype)   # no extra pass if caller already narrow
    x_c = x.astype(compute_dtype)

    adj_bytes = np.dtype(adj_storage_dtype).itemsize
    x_bytes = np.dtype(compute_dtype).itemsize
    out_bytes = np.dtype(out_dtype).itemsize

    # bb = 1 by default: most grid steps (pipelining / megacore) and least VMEM.
    bb = 1 if batch_block is None else batch_block
    if B % bb != 0:
        raise ValueError(f"batch_block={bb} must divide B={B}")
    gb = B // bb

    phys_vmem = _vmem_capacity_bytes()
    budget = (min(32 << 20, phys_vmem // 2) if vmem_budget_mb is None
              else vmem_budget_mb << 20)

    # Column-tile candidates for the adjacency reduction axis (largest first).
    if Np % 128 == 0:
        tj_cands = [t for t in range(Np, 127, -128) if Np % t == 0]
    else:
        tj_cands = [Np]
    # TODO(synk): for very large N also tile the output rows (i); that needs either a
    # precomputed degree vector or a second column-oriented adj view, because the
    # normalization uses column sums.

    def step_bytes(tj):
        return (2 * bb * Np * tj * adj_bytes            # adj tile, double buffered
                + bb * Np * tj * (4 + x_bytes)          # in-kernel widened adj copies
                + 2 * bb * Np * C_in * x_bytes          # x (full rows per batch step)
                + 2 * bb * Np * c_pad * out_bytes       # output tile
                + bb * Np * (4 * c_b + 1) * 4           # h / deg accumulators (f32)
                + bb * Np * (4 * c_b + 3 * c_pad) * 4)  # finalize f32 intermediates

    tj = tj_cands[-1]
    for t in tj_cands:                                  # largest tile that fits budget
        if step_bytes(t) <= budget:
            tj = t
            break
    # Prefer >= 4 total grid steps (>= 2 per v7x TensorCore, and enough steps for the
    # software pipeline to hide the adj DMA).
    while gb * (Np // tj) < 4 and any(t < tj for t in tj_cands):
        tj = max(t for t in tj_cands if t < tj)
    gj = Np // tj

    packed = _pack_params(params, C_in, c_b, c_pad, compute_dtype)
    packed_vals = [packed[k] for k in PACKED_ORDER]
    w_bytes = sum(int(v.size) * v.dtype.itemsize for v in packed_vals)

    vmem_limit = int(min(max(step_bytes(tj) + 2 * w_bytes + (2 << 20), 32 << 20),
                         phys_vmem - (1 << 20)))

    in_specs = [
        pl.BlockSpec((bb, Np, C_in), lambda b, j: (b, 0, 0)),   # x (resident per b)
        pl.BlockSpec((bb, Np, tj), lambda b, j: (b, 0, j)),     # adj column tile
    ] + [_const_spec(v.shape) for v in packed_vals]
    out_spec = pl.BlockSpec((bb, Np, c_pad), lambda b, j: (b, 0, 0))

    out_pad = pl.pallas_call(
        functools.partial(_ggru_kernel, c_in=C_in, c_b=c_b, c_pad=c_pad,
                          tj=tj, cdt=compute_dtype),
        grid=(gb, gj),
        in_specs=in_specs,
        out_specs=out_spec,
        out_shape=jax.ShapeDtypeStruct((B, Np, c_pad), out_dtype),
        scratch_shapes=[pltpu.VMEM((bb, Np, 4 * c_b), jnp.float32),
                        pltpu.VMEM((bb, Np, 1), jnp.float32)],
        compiler_params=pltpu.CompilerParams(
            dimension_semantics=("parallel", "arbitrary"),
            vmem_limit_bytes=vmem_limit),
    )(x_c, adj, *packed_vals)

    if return_padded:
        return out_pad                       # (B, Np, c_pad): no extra slice pass
    return out_pad[:, :N, :C_out]


# --------------------------- deterministic params --------------------------- #
def xavier_uniform(key, out_f, in_f, gain):
    bound = gain * jnp.sqrt(6.0 / (in_f + out_f))
    return jax.random.uniform(key, (out_f, in_f), jnp.float32, -bound, bound)


def init_params(key, c_in, c_out):
    gain = jnp.sqrt(2.0)  # calculate_gain('relu')
    ks = jax.random.split(key, 10)
    # torch layout (out, in), transposed to (in, out) for the kernel / reference.
    wr_n = xavier_uniform(ks[0], c_in, c_in, gain)
    wr_l = xavier_uniform(ks[1], c_in, 2 * c_in, gain)
    wz_n = xavier_uniform(ks[2], c_in, c_in, gain)
    wz_l = xavier_uniform(ks[3], c_out, 2 * c_in, gain)
    w_nh = xavier_uniform(ks[4], c_in, c_in, gain)
    w_ni = xavier_uniform(ks[5], c_out, 2 * c_in, gain)
    w_pr = xavier_uniform(ks[6], c_out, c_in, gain)
    b_nh = jax.random.uniform(ks[7], (1, c_in), jnp.float32,
                              -1.0 / jnp.sqrt(c_in), 1.0 / jnp.sqrt(c_in))
    b_ni = jax.random.uniform(ks[8], (1, c_out), jnp.float32,
                              -1.0 / jnp.sqrt(2 * c_in), 1.0 / jnp.sqrt(2 * c_in))
    b_pr = jax.random.uniform(ks[9], (1, c_out), jnp.float32,
                              -1.0 / jnp.sqrt(c_in), 1.0 / jnp.sqrt(c_in))
    return {
        "wr_n": wr_n.T, "wr_l": wr_l.T,
        "wz_n": wz_n.T, "wz_l": wz_l.T,
        "w_nh": w_nh.T, "b_nh": b_nh,
        "w_ni": w_ni.T, "b_ni": b_ni,
        "w_proj": w_pr.T, "b_proj": b_pr,
    }


# ----------------------------- pure-JAX reference --------------------------- #
def ggru_reference(x, adj, P):
    dot = functools.partial(jnp.dot, precision="highest")
    deg = jnp.sum(adj, axis=1)[..., None] + 1.0
    agg = lambda h: jnp.einsum("bij,bjc->bic", adj, h, precision="highest") / deg
    hr = agg(dot(x, P["wr_n"]))
    r = jax.nn.sigmoid(dot(jnp.concatenate([x, hr], -1), P["wr_l"]))
    hz = agg(dot(x, P["wz_n"]))
    z = jax.nn.sigmoid(dot(jnp.concatenate([x, hz], -1), P["wz_l"]))
    h = agg(dot(x, P["w_nh"]) + P["b_nh"])
    n = jnp.tanh(dot(jnp.concatenate([x, r * h], -1), P["w_ni"]) + P["b_ni"])
    neigh = agg(x)
    return (1.0 - z) * n + z * (dot(neigh, P["w_proj"]) + P["b_proj"])


# ----------------------------------- main ----------------------------------- #
if __name__ == "__main__":
    B, N, C_IN, C_OUT = 4, 32, 16, 8

    key = jax.random.PRNGKey(0)
    kx, kadj, kp = jax.random.split(key, 3)

    x = jax.random.normal(kx, (B, N, C_IN), jnp.float32)
    adj_f32 = jax.random.bernoulli(kadj, 0.5, (B, N, N)).astype(jnp.float32)
    adj_i8 = adj_f32.astype(jnp.int8)     # narrow 0/1 adjacency storage (no cast pass)
    params = init_params(kp, C_IN, C_OUT)

    ref = ggru_reference(x, adj_f32, params)

    # f32 compute path: checks the restructured algebra.
    out_f32 = jax.block_until_ready(
        ggru_forward(x, adj_i8, params, compute_dtype=jnp.float32))
    assert out_f32.shape == (B, N, C_OUT), out_f32.shape
    err_f32 = float(jnp.max(jnp.abs(out_f32 - ref)))
    assert err_f32 < 2e-3, f"f32 path max abs error too large: {err_f32}"

    # bf16 fast path (default compute/output dtype).
    out_bf16 = jax.block_until_ready(ggru_forward(x, adj_i8, params))
    assert out_bf16.shape == (B, N, C_OUT), out_bf16.shape
    err_bf16 = float(jnp.max(jnp.abs(out_bf16.astype(jnp.float32) - ref)))
    assert err_bf16 < 5e-2, f"bf16 path max abs error too large: {err_bf16}"

    print("KERNEL_OK")
</pallas_src>

<mosaic_0001>
module attributes {stable_mosaic.version = 11 : i64} {
  func.func @_ggru_kernel(%arg0: i32, %arg1: i32, %arg2: memref<1x32x16xf32, #tpu.memory_space<vmem>>, %arg3: memref<1x32x32xi8, #tpu.memory_space<vmem>>, %arg4: memref<16x512xf32, #tpu.memory_space<vmem>>, %arg5: memref<1x512xf32, #tpu.memory_space<vmem>>, %arg6: memref<16x384xf32, #tpu.memory_space<vmem>>, %arg7: memref<1x384xf32, #tpu.memory_space<vmem>>, %arg8: memref<128x128xf32, #tpu.memory_space<vmem>>, %arg9: memref<128x128xf32, #tpu.memory_space<vmem>>, %arg10: memref<128x128xf32, #tpu.memory_space<vmem>>, %arg11: memref<128x128xf32, #tpu.memory_space<vmem>>, %arg12: memref<1x128xf32, #tpu.memory_space<vmem>>, %arg13: memref<1x32x128xf32, #tpu.memory_space<vmem>>, %arg14: memref<1x32x512xf32, #tpu.memory_space<vmem>>, %arg15: memref<1x32x1xf32, #tpu.memory_space<vmem>>) attributes {dimension_semantics = [#tpu.dimension_semantics<parallel>, #tpu.dimension_semantics<arbitrary>], iteration_bounds = array<i64: 4, 1>, scalar_prefetch = 0 : i64, scratch_operands = 2 : i64, tpu.core_type = #tpu.core_type<tc>, window_params = [{transform_indices = @transform_0, window_bounds = array<i64: 1, 32, 16>}, {transform_indices = @transform_1, window_bounds = array<i64: 1, 32, 32>}, {pipeline_mode = #tpu.pipeline_mode<synchronous>, transform_indices = @transform_2, window_bounds = array<i64: 16, 512>}, {pipeline_mode = #tpu.pipeline_mode<synchronous>, transform_indices = @transform_3, window_bounds = array<i64: 1, 512>}, {pipeline_mode = #tpu.pipeline_mode<synchronous>, transform_indices = @transform_4, window_bounds = array<i64: 16, 384>}, {pipeline_mode = #tpu.pipeline_mode<synchronous>, transform_indices = @transform_5, window_bounds = array<i64: 1, 384>}, {pipeline_mode = #tpu.pipeline_mode<synchronous>, transform_indices = @transform_6, window_bounds = array<i64: 128, 128>}, {pipeline_mode = #tpu.pipeline_mode<synchronous>, transform_indices = @transform_7, window_bounds = array<i64: 128, 128>}, {pipeline_mode = #tpu.pipeline_mode<synchronous>, transform_indices = @transform_8, window_bounds = array<i64: 128, 128>}, {pipeline_mode = #tpu.pipeline_mode<synchronous>, transform_indices = @transform_9, window_bounds = array<i64: 128, 128>}, {pipeline_mode = #tpu.pipeline_mode<synchronous>, transform_indices = @transform_10, window_bounds = array<i64: 1, 128>}, {transform_indices = @transform_11, window_bounds = array<i64: 1, 32, 128>}]} {
    %c0_i32 = arith.constant 0 : i32
    %0 = arith.cmpi eq, %arg1, %c0_i32 : i32
    %1 = arith.extui %0 : i1 to i32
    %c0_i32_0 = arith.constant 0 : i32
    %2 = arith.cmpi ne, %1, %c0_i32_0 : i32
    scf.if %2 {
      %cst_21 = arith.constant 0.000000e+00 : f32
      %27 = vector.broadcast %cst_21 : f32 to vector<1x32x512xf32>
      %c0_22 = arith.constant 0 : index
      %c0_23 = arith.constant 0 : index
      %c0_24 = arith.constant 0 : index
      %28 = vector.load %arg14[%c0_22, %c0_23, %c0_24] : memref<1x32x512xf32, #tpu.memory_space<vmem>>, vector<1x32x512xf32>
      tpu.vector_store %arg14[%c0_22, %c0_23, %c0_24], %27 {strides = array<i32>} : memref<1x32x512xf32, #tpu.memory_space<vmem>>, vector<1x32x512xf32>,
    } else {
    }
    %c32_i32 = arith.constant 32 : i32
    %3 = arith.muli %arg1, %c32_i32 : i32
    %4 = tpu.assume_multiple %3, 32 : i32
    %c0 = arith.constant 0 : index
    %5 = arith.index_cast %4 : i32 to index
    %c0_1 = arith.constant 0 : index
    %6 = vector.load %arg2[%c0, %5, %c0_1] : memref<1x32x16xf32, #tpu.memory_space<vmem>>, vector<1x32x16xf32>
    %7 = vector.shape_cast %6 : vector<1x32x16xf32> to vector<32x16xf32>
    %c0_2 = arith.constant 0 : index
    %c0_3 = arith.constant 0 : index
    %8 = vector.load %arg4[%c0_2, %c0_3] : memref<16x512xf32, #tpu.memory_space<vmem>>, vector<16x512xf32>
    %cst = arith.constant dense<0.000000e+00> : vector<32x512xf32>
    %9 = tpu.matmul %7, %8, %cst {dimension_numbers = #tpu.dot_dimension_numbers<[1], [0], [0], [1], [0, 0, 1, 1], [], []>} : vector<32x16xf32>, vector<16x512xf32>, vector<32x512xf32> -> vector<32x512xf32>
    %c0_4 = arith.constant 0 : index
    %c0_5 = arith.constant 0 : index
    %10 = vector.load %arg5[%c0_4, %c0_5] : memref<1x512xf32, #tpu.memory_space<vmem>>, vector<1x512xf32>
    %11 = vector.broadcast %10 : vector<1x512xf32> to vector<32x512xf32>
    %12 = arith.addf %9, %11 : vector<32x512xf32>
    %13 = vector.shape_cast %12 : vector<32x512xf32> to vector<1x32x512xf32>
    %c0_6 = arith.constant 0 : index
    %c0_7 = arith.constant 0 : index
    %c0_8 = arith.constant 0 : index
    %14 = vector.load %arg3[%c0_6, %c0_7, %c0_8] : memref<1x32x32xi8, #tpu.memory_space<vmem>>, vector<1x32x32xi8>
    %15 = arith.sitofp %14 : vector<1x32x32xi8> to vector<1x32x32xf32>
    %cst_9 = arith.constant dense<0.000000e+00> : vector<1x32xf32>
    %16 = vector.multi_reduction <add>, %15, %cst_9 [1] : vector<1x32x32xf32> to vector<1x32xf32>
    %17 = vector.shape_cast %16 : vector<1x32xf32> to vector<1x32x1xf32>
    %c0_10 = arith.constant 0 : index
    %18 = arith.index_cast %4 : i32 to index
    %c0_11 = arith.constant 0 : index
    %19 = vector.load %arg15[%c0_10, %18, %c0_11] : memref<1x32x1xf32, #tpu.memory_space<vmem>>, vector<1x32x1xf32>
    tpu.vector_store %arg15[%c0_10, %18, %c0_11], %17 {strides = array<i32>} : memref<1x32x1xf32, #tpu.memory_space<vmem>>, vector<1x32x1xf32>,
    %c0_12 = arith.constant 0 : index
    %c0_13 = arith.constant 0 : index
    %c0_14 = arith.constant 0 : index
    %20 = vector.load %arg14[%c0_12, %c0_13, %c0_14] : memref<1x32x512xf32, #tpu.memory_space<vmem>>, vector<1x32x512xf32>
    "tpu.trace_start"() <{level = 10 : i32, message = "bij,bjc->bic"}> : () -> ()
    %cst_15 = arith.constant dense<0.000000e+00> : vector<1x32x512xf32>
    %21 = tpu.matmul %15, %13, %cst_15 {dimension_numbers = #tpu.dot_dimension_numbers<[2], [1], [1], [2], [0, 0, 0, 1, 1, 2], [0], [0]>} : vector<1x32x32xf32>, vector<1x32x512xf32>, vector<1x32x512xf32> -> vector<1x32x512xf32>
    "tpu.trace_stop"() : () -> ()
    %22 = arith.addf %20, %21 : vector<1x32x512xf32>
    %c0_16 = arith.constant 0 : index
    %c0_17 = arith.constant 0 : index
    %c0_18 = arith.constant 0 : index
    %23 = vector.load %arg14[%c0_16, %c0_17, %c0_18] : memref<1x32x512xf32, #tpu.memory_space<vmem>>, vector<1x32x512xf32>
    tpu.vector_store %arg14[%c0_16, %c0_17, %c0_18], %22 {strides = array<i32>} : memref<1x32x512xf32, #tpu.memory_space<vmem>>, vector<1x32x512xf32>,
    %c0_i32_19 = arith.constant 0 : i32
    %24 = arith.cmpi eq, %arg1, %c0_i32_19 : i32
    %25 = arith.extui %24 : i1 to i32
    %c0_i32_20 = arith.constant 0 : i32
    %26 = arith.cmpi ne, %25, %c0_i32_20 : i32
    scf.if %26 {
      %c0_21 = arith.constant 0 : index
      %c0_22 = arith.constant 0 : index
      %c0_23 = arith.constant 0 : index
      %27 = vector.load %arg15[%c0_21, %c0_22, %c0_23] : memref<1x32x1xf32, #tpu.memory_space<vmem>>, vector<1x32x1xf32>
      %cst_24 = arith.constant 1.000000e+00 : f32
      %28 = vector.broadcast %cst_24 : f32 to vector<1x32x1xf32>
      %29 = arith.addf %27, %28 : vector<1x32x1xf32>
      %cst_25 = arith.constant 1.000000e+00 : f32
      %30 = vector.broadcast %cst_25 : f32 to vector<1x32x1xf32>
      %31 = arith.divf %30, %29 : vector<1x32x1xf32>
      %c0_26 = arith.constant 0 : index
      %c0_27 = arith.constant 0 : index
      %c0_28 = arith.constant 0 : index
      %32 = vector.load %arg14[%c0_26, %c0_27, %c0_28] : memref<1x32x512xf32, #tpu.memory_space<vmem>>, vector<1x32x512xf32>
      %33 = vector.broadcast %31 : vector<1x32x1xf32> to vector<1x32x512xf32>
      %34 = arith.mulf %32, %33 : vector<1x32x512xf32>
      %35 = vector.shape_cast %34 : vector<1x32x512xf32> to vector<32x512xf32>
      %36 = vector.extract_strided_slice %35 {offsets = [0, 0], sizes = [32, 128], strides = [1, 1]} : vector<32x512xf32> to vector<32x128xf32>
      %37 = vector.extract_strided_slice %35 {offsets = [0, 128], sizes = [32, 128], strides = [1, 1]} : vector<32x512xf32> to vector<32x128xf32>
      %38 = vector.extract_strided_slice %35 {offsets = [0, 256], sizes = [32, 128], strides = [1, 1]} : vector<32x512xf32> to vector<32x128xf32>
      %39 = vector.extract_strided_slice %35 {offsets = [0, 384], sizes = [32, 128], strides = [1, 1]} : vector<32x512xf32> to vector<32x128xf32>
      %c0_29 = arith.constant 0 : index
      %c0_30 = arith.constant 0 : index
      %c0_31 = arith.constant 0 : index
      %40 = vector.load %arg2[%c0_29, %c0_30, %c0_31] : memref<1x32x16xf32, #tpu.memory_space<vmem>>, vector<1x32x16xf32>
      %41 = vector.shape_cast %40 : vector<1x32x16xf32> to vector<32x16xf32>
      %c0_32 = arith.constant 0 : index
      %c0_33 = arith.constant 0 : index
      %42 = vector.load %arg6[%c0_32, %c0_33] : memref<16x384xf32, #tpu.memory_space<vmem>>, vector<16x384xf32>
      %cst_34 = arith.constant dense<0.000000e+00> : vector<32x384xf32>
      %43 = tpu.matmul %41, %42, %cst_34 {dimension_numbers = #tpu.dot_dimension_numbers<[1], [0], [0], [1], [0, 0, 1, 1], [], []>} : vector<32x16xf32>, vector<16x384xf32>, vector<32x384xf32> -> vector<32x384xf32>
      %c0_35 = arith.constant 0 : index
      %c0_36 = arith.constant 0 : index
      %44 = vector.load %arg7[%c0_35, %c0_36] : memref<1x384xf32, #tpu.memory_space<vmem>>, vector<1x384xf32>
      %45 = vector.broadcast %44 : vector<1x384xf32> to vector<32x384xf32>
      %46 = arith.addf %43, %45 : vector<32x384xf32>
      %47 = vector.extract_strided_slice %46 {offsets = [0, 0], sizes = [32, 128], strides = [1, 1]} : vector<32x384xf32> to vector<32x128xf32>
      %48 = vector.extract_strided_slice %46 {offsets = [0, 128], sizes = [32, 128], strides = [1, 1]} : vector<32x384xf32> to vector<32x128xf32>
      %49 = vector.extract_strided_slice %46 {offsets = [0, 256], sizes = [32, 128], strides = [1, 1]} : vector<32x384xf32> to vector<32x128xf32>
      %c0_37 = arith.constant 0 : index
      %c0_38 = arith.constant 0 : index
      %50 = vector.load %arg8[%c0_37, %c0_38] : memref<128x128xf32, #tpu.memory_space<vmem>>, vector<128x128xf32>
      %cst_39 = arith.constant dense<0.000000e+00> : vector<32x128xf32>
      %51 = tpu.matmul %36, %50, %cst_39 {dimension_numbers = #tpu.dot_dimension_numbers<[1], [0], [0], [1], [0, 0, 1, 1], [], []>} : vector<32x128xf32>, vector<128x128xf32>, vector<32x128xf32> -> vector<32x128xf32>
      %52 = arith.addf %49, %51 : vector<32x128xf32>
      %53 = arith.negf %52 : vector<32x128xf32>
      %54 = math.exp %53 : vector<32x128xf32>
      %cst_40 = arith.constant 1.000000e+00 : f32
      %55 = vector.broadcast %cst_40 : f32 to vector<32x128xf32>
      %56 = arith.addf %55, %54 : vector<32x128xf32>
      %57 = arith.divf %55, %56 : vector<32x128xf32>
      %c0_41 = arith.constant 0 : index
      %c0_42 = arith.constant 0 : index
      %58 = vector.load %arg9[%c0_41, %c0_42] : memref<128x128xf32, #tpu.memory_space<vmem>>, vector<128x128xf32>
      %cst_43 = arith.constant dense<0.000000e+00> : vector<32x128xf32>
      %59 = tpu.matmul %37, %58, %cst_43 {dimension_numbers = #tpu.dot_dimension_numbers<[1], [0], [0], [1], [0, 0, 1, 1], [], []>} : vector<32x128xf32>, vector<128x128xf32>, vector<32x128xf32> -> vector<32x128xf32>
      %60 = arith.addf %47, %59 : vector<32x128xf32>
      %61 = arith.negf %60 : vector<32x128xf32>
      %62 = math.exp %61 : vector<32x128xf32>
      %cst_44 = arith.constant 1.000000e+00 : f32
      %63 = vector.broadcast %cst_44 : f32 to vector<32x128xf32>
      %64 = arith.addf %63, %62 : vector<32x128xf32>
      %65 = arith.divf %63, %64 : vector<32x128xf32>
      %66 = arith.mulf %57, %38 : vector<32x128xf32>
      %c0_45 = arith.constant 0 : index
      %c0_46 = arith.constant 0 : index
      %67 = vector.load %arg10[%c0_45, %c0_46] : memref<128x128xf32, #tpu.memory_space<vmem>>, vector<128x128xf32>
      %cst_47 = arith.constant dense<0.000000e+00> : vector<32x128xf32>
      %68 = tpu.matmul %66, %67, %cst_47 {dimension_numbers = #tpu.dot_dimension_numbers<[1], [0], [0], [1], [0, 0, 1, 1], [], []>} : vector<32x128xf32>, vector<128x128xf32>, vector<32x128xf32> -> vector<32x128xf32>
      %69 = arith.addf %48, %68 : vector<32x128xf32>
      %70 = math.tanh %69 : vector<32x128xf32>
      %c0_48 = arith.constant 0 : index
      %c0_49 = arith.constant 0 : index
      %71 = vector.load %arg11[%c0_48, %c0_49] : memref<128x128xf32, #tpu.memory_space<vmem>>, vector<128x128xf32>
      %cst_50 = arith.constant dense<0.000000e+00> : vector<32x128xf32>
      %72 = tpu.matmul %39, %71, %cst_50 {dimension_numbers = #tpu.dot_dimension_numbers<[1], [0], [0], [1], [0, 0, 1, 1], [], []>} : vector<32x128xf32>, vector<128x128xf32>, vector<32x128xf32> -> vector<32x128xf32>
      %c0_51 = arith.constant 0 : index
      %c0_52 = arith.constant 0 : index
      %73 = vector.load %arg12[%c0_51, %c0_52] : memref<1x128xf32, #tpu.memory_space<vmem>>, vector<1x128xf32>
      %74 = vector.broadcast %73 : vector<1x128xf32> to vector<32x128xf32>
      %75 = arith.addf %72, %74 : vector<32x128xf32>
      %cst_53 = arith.constant 1.000000e+00 : f32
      %76 = vector.broadcast %cst_53 : f32 to vector<32x128xf32>
      %77 = arith.subf %76, %65 : vector<32x128xf32>
      %78 = arith.mulf %77, %70 : vector<32x128xf32>
      %79 = arith.mulf %65, %75 : vector<32x128xf32>
      %80 = arith.addf %78, %79 : vector<32x128xf32>
      %81 = vector.shape_cast %80 : vector<32x128xf32> to vector<1x32x128xf32>
      %c0_54 = arith.constant 0 : index
      %c0_55 = arith.constant 0 : index
      %c0_56 = arith.constant 0 : index
      %82 = vector.load %arg13[%c0_54, %c0_55, %c0_56] : memref<1x32x128xf32, #tpu.memory_space<vmem>>, vector<1x32x128xf32>
      tpu.vector_store %arg13[%c0_54, %c0_55, %c0_56], %81 {strides = array<i32>} : memref<1x32x128xf32, #tpu.memory_space<vmem>>, vector<1x32x128xf32>,
    } else {
    }
    return
  }
  func.func @transform_0(%arg0: i32, %arg1: i32) -> (i32, i32, i32) {
    %c0_i32 = arith.constant 0 : i32
    %c0_i32_0 = arith.constant 0 : i32
    %c0_i32_1 = arith.constant 0 : i32
    return %arg0, %c0_i32, %c0_i32_0 : i32, i32, i32
  }
  func.func @transform_1(%arg0: i32, %arg1: i32) -> (i32, i32, i32) {
    %c0_i32 = arith.constant 0 : i32
    %c0_i32_0 = arith.constant 0 : i32
    return %arg0, %c0_i32, %arg1 : i32, i32, i32
  }
  func.func @transform_2(%arg0: i32, %arg1: i32) -> (i32, i32) {
    %c0_i32 = arith.constant 0 : i32
    %c0_i32_0 = arith.constant 0 : i32
    %c0_i32_1 = arith.constant 0 : i32
    return %c0_i32, %c0_i32_0 : i32, i32
  }
  func.func @transform_3(%arg0: i32, %arg1: i32) -> (i32, i32) {
    %c0_i32 = arith.constant 0 : i32
    %c0_i32_0 = arith.constant 0 : i32
    %c0_i32_1 = arith.constant 0 : i32
    return %c0_i32, %c0_i32_0 : i32, i32
  }
  func.func @transform_4(%arg0: i32, %arg1: i32) -> (i32, i32) {
    %c0_i32 = arith.constant 0 : i32
    %c0_i32_0 = arith.constant 0 : i32
    %c0_i32_1 = arith.constant 0 : i32
    return %c0_i32, %c0_i32_0 : i32, i32
  }
  func.func @transform_5(%arg0: i32, %arg1: i32) -> (i32, i32) {
    %c0_i32 = arith.constant 0 : i32
    %c0_i32_0 = arith.constant 0 : i32
    %c0_i32_1 = arith.constant 0 : i32
    return %c0_i32, %c0_i32_0 : i32, i32
  }
  func.func @transform_6(%arg0: i32, %arg1: i32) -> (i32, i32) {
    %c0_i32 = arith.constant 0 : i32
    %c0_i32_0 = arith.constant 0 : i32
    %c0_i32_1 = arith.constant 0 : i32
    return %c0_i32, %c0_i32_0 : i32, i32
  }
  func.func @transform_7(%arg0: i32, %arg1: i32) -> (i32, i32) {
    %c0_i32 = arith.constant 0 : i32
    %c0_i32_0 = arith.constant 0 : i32
    %c0_i32_1 = arith.constant 0 : i32
    return %c0_i32, %c0_i32_0 : i32, i32
  }
  func.func @transform_8(%arg0: i32, %arg1: i32) -> (i32, i32) {
    %c0_i32 = arith.constant 0 : i32
    %c0_i32_0 = arith.constant 0 : i32
    %c0_i32_1 = arith.constant 0 : i32
    return %c0_i32, %c0_i32_0 : i32, i32
  }
  func.func @transform_9(%arg0: i32, %arg1: i32) -> (i32, i32) {
    %c0_i32 = arith.constant 0 : i32
    %c0_i32_0 = arith.constant 0 : i32
    %c0_i32_1 = arith.constant 0 : i32
    return %c0_i32, %c0_i32_0 : i32, i32
  }
  func.func @transform_10(%arg0: i32, %arg1: i32) -> (i32, i32) {
    %c0_i32 = arith.constant 0 : i32
    %c0_i32_0 = arith.constant 0 : i32
    %c0_i32_1 = arith.constant 0 : i32
    return %c0_i32, %c0_i32_0 : i32, i32
  }
  func.func @transform_11(%arg0: i32, %arg1: i32) -> (i32, i32, i32) {
    %c0_i32 = arith.constant 0 : i32
    %c0_i32_0 = arith.constant 0 : i32
    %c0_i32_1 = arith.constant 0 : i32
    return %arg0, %c0_i32, %c0_i32_0 : i32, i32, i32
  }
}

</mosaic_0001>

<llo_original>
// kernel: ggru_forward.1
$region0: #{ggru_forward.1}
  #allocation0 [shape = 'u32[]', space=smem, size = 0x4, offset = 0x4, fixed_abs, tag = 'smem constant byte address 0x4 - core index']
  #allocation1 [shape = 'u32[144,128]{1,0:T(1,128)}', space=vmem, size = 0x12000, scoped, tag = 'internal scratch']
  #allocation2 [shape = 'f32[1,32,512]{2,1,0:T(8,128)}', space=vmem, size = 0x10000, scoped, tag = 'scratch operand']
  #allocation3 [shape = 'f32[1,32,1]{2,1,0:T(8,128)}', space=vmem, size = 0x4000, scoped, tag = 'scratch operand']
  %s0 = inlined_call_operand.vmem [shape: f32[4,32,16], index: 0, kind: input, shape index: {}]
  %s1 = inlined_call_operand.vmem [shape: s8[4,32,32], index: 1, kind: input, shape index: {}]
  %s2 = inlined_call_operand.vmem [shape: f32[16,512], index: 2, kind: input, shape index: {}]
  %s3 = inlined_call_operand.vmem [shape: f32[1,512], index: 3, kind: input, shape index: {}]
  %s4 = inlined_call_operand.vmem [shape: f32[16,384], index: 4, kind: input, shape index: {}]
  %s5 = inlined_call_operand.vmem [shape: f32[1,384], index: 5, kind: input, shape index: {}]
  %s6 = inlined_call_operand.vmem [shape: f32[128,128], index: 6, kind: input, shape index: {}]
  %s7 = inlined_call_operand.vmem [shape: f32[128,128], index: 7, kind: input, shape index: {}]
  %s8 = inlined_call_operand.vmem [shape: f32[128,128], index: 8, kind: input, shape index: {}]
  %s9 = inlined_call_operand.vmem [shape: f32[128,128], index: 9, kind: input, shape index: {}]
  %s10 = inlined_call_operand.vmem [shape: f32[1,128], index: 10, kind: input, shape index: {}]
  %s11 = inlined_call_operand.vmem [shape: f32[4,32,128], index: 11, kind: output, shape index: {}]
  %s12 = sld [smem:[#allocation0]]
  $region85: #{ggru_forward.1} parent=0
    _
  %s14 = ssub.s32 1, %s12
  %s15 = scalar_select 0, %s14, %s12
  loop: start=0, step=1, limit=6
  $region2: #{ggru_forward.1} parent=0 // loop_pre_header
    _
  $region3: #{ggru_forward.1} parent=0 // loop_header
    %s17 = sphi 0, %s21
    %p18 = scmp.ge.s32.totalorder %s17, 6
    %s24 = sphi 0, %s36
    %s25 = sphi 0, %s32
    %s26 = sphi 0, %s24
    %s27 = sphi 0, %s25
    %s28 = sphi 0, %s26
    %s29 = sphi 0, %s27
    %s39 = sphi 0, %s41
    %s42 = sphi 0, %s39
    %s43 = sphi 0, %s42
    %s59 = sphi 0, %s43
    %s67 = sphi 0, %s69
    %s70 = sphi 0, %s67
    %s71 = sphi 0, %s70
    %s87 = sphi 0, %s71
    %s91 = sphi 0, %s91
    %s93 = sphi 0, %s91
    %s94 = sphi 0, %s93
    %s108 = sphi 0, %s94
    %s112 = sphi 0, %s112
    %s114 = sphi 0, %s112
    %s115 = sphi 0, %s114
    %s129 = sphi 0, %s115
    %s133 = sphi 0, %s133
    %s135 = sphi 0, %s133
    %s136 = sphi 0, %s135
    %s150 = sphi 0, %s136
    %s154 = sphi 0, %s154
    %s156 = sphi 0, %s154
    %s157 = sphi 0, %s156
    %s171 = sphi 0, %s157
    %s175 = sphi 0, %s175
    %s177 = sphi 0, %s175
    %s178 = sphi 0, %s177
    %s192 = sphi 0, %s178
    %s196 = sphi 0, %s196
    %s198 = sphi 0, %s196
    %s199 = sphi 0, %s198
    %s213 = sphi 0, %s199
    %s217 = sphi 0, %s217
    %s219 = sphi 0, %s217
    %s220 = sphi 0, %s219
    %s234 = sphi 0, %s220
    %s238 = sphi 0, %s238
    %s240 = sphi 0, %s238
    %s241 = sphi 0, %s240
    %s255 = sphi 0, %s241
    %s259 = sphi 0, %s259
    %s261 = sphi 0, %s259
    %s262 = sphi 0, %s261
    %s276 = sphi 0, %s262
    %s282 = sphi 0, %s284
    %s285 = sphi 0, %s282
    %s286 = sphi 0, %s285
    %s302 = sphi 0, %s286
  $region4: #{ggru_forward.1} parent=0 // loop_header_branch
    %20 = sbr.rel (%p18) target = $region8
  $region5: #{ggru_forward.1} parent=0 // loop_body
    %s22 = ssub.s32 %s17, 1
    %s23 = ssub.s32 %s17, 2
    %s30 = sadd.s32 1, %s25
    %p31 = scmp.ge.s32.totalorder %s30, 1
    %s32 = scalar_select %p31, 0, %s30
    %s33 = sadd.s32 1, %s24
    %s34 = scalar_select %p31, %s33, %s24
    %p35 = scmp.ge.s32.totalorder %s34, 4
    %s36 = scalar_select %p35, 0, %s34
    %s37 = ssub.s32 %s24, %s36
    %p38 = scmp.eq.s32.totalorder %s37, 0
    %s40 = sadd.s32 %s39, 1
    %s41 = scalar_select %p38, %s39, %s40
    %p44 = pneg %p38
    %p45 = scmp.eq.s32.totalorder %s17, 3
    %p46 = por %p44, %p45
    %p47 = scmp.ne.s32.totalorder %s39, %s42
    %p48 = scmp.eq.s32.totalorder %s17, 0
    %p49 = por %p47, %p48
    %p50 = scmp.ne.s32.totalorder %s39, %s42
    %p51 = scmp.eq.s32.totalorder %s22, 3
    %p52 = por %p50, %p51
    %p53 = scmp.ne.s32.totalorder %s42, %s43
    %p54 = scmp.eq.s32.totalorder %s22, 0
    %p55 = por %p53, %p54
    %p56 = scmp.ne.s32.totalorder %s42, %s43
    %p57 = scmp.eq.s32.totalorder %s23, 3
    %p58 = por %p56, %p57
    %p60 = scmp.ne.s32.totalorder %s43, %s59
    %p61 = scmp.eq.s32.totalorder %s23, 0
    %p62 = por %p60, %p61
    %s63 = ssub.s32 %s24, %s36
    %s64 = ssub.s32 %s25, %s32
    %s65 = sor.u32 %s63, %s64
    %p66 = scmp.eq.s32.totalorder %s65, 0
    %s68 = sadd.s32 %s67, 1
    %s69 = scalar_select %p66, %s67, %s68
    %p72 = pneg %p66
    %p73 = scmp.eq.s32.totalorder %s17, 3
    %p74 = por %p72, %p73
    %p75 = scmp.ne.s32.totalorder %s67, %s70
    %p76 = scmp.eq.s32.totalorder %s17, 0
    %p77 = por %p75, %p76
    %p78 = scmp.ne.s32.totalorder %s67, %s70
    %p79 = scmp.eq.s32.totalorder %s22, 3
    %p80 = por %p78, %p79
    %p81 = scmp.ne.s32.totalorder %s70, %s71
    %p82 = scmp.eq.s32.totalorder %s22, 0
    %p83 = por %p81, %p82
    %p84 = scmp.ne.s32.totalorder %s70, %s71
    %p85 = scmp.eq.s32.totalorder %s23, 3
    %p86 = por %p84, %p85
    %p88 = scmp.ne.s32.totalorder %s71, %s87
    %p89 = scmp.eq.s32.totalorder %s23, 0
    %p90 = por %p88, %p89
    %s92 = sadd.s32 %s91, 1
    %p95 = scmp.eq.s32.totalorder %s17, 3
    %p96 = scmp.ne.s32.totalorder %s91, %s93
    %p97 = scmp.eq.s32.totalorder %s17, 0
    %p98 = por %p96, %p97
    %p99 = scmp.ne.s32.totalorder %s91, %s93
    %p100 = scmp.eq.s32.totalorder %s22, 3
    %p101 = por %p99, %p100
    %p102 = scmp.ne.s32.totalorder %s93, %s94
    %p103 = scmp.eq.s32.totalorder %s22, 0
    %p104 = por %p102, %p103
    %p105 = scmp.ne.s32.totalorder %s93, %s94
    %p106 = scmp.eq.s32.totalorder %s23, 3
    %p107 = por %p105, %p106
    %p109 = scmp.ne.s32.totalorder %s94, %s108
    %p110 = scmp.eq.s32.totalorder %s23, 0
    %p111 = por %p109, %p110
    %s113 = sadd.s32 %s112, 1
    %p116 = scmp.eq.s32.totalorder %s17, 3
    %p117 = scmp.ne.s32.totalorder %s112, %s114
    %p118 = scmp.eq.s32.totalorder %s17, 0
    %p119 = por %p117, %p118
    %p120 = scmp.ne.s32.totalorder %s112, %s114
    %p121 = scmp.eq.s32.totalorder %s22, 3
    %p122 = por %p120, %p121
    %p123 = scmp.ne.s32.totalorder %s114, %s115
    %p124 = scmp.eq.s32.totalorder %s22, 0
    %p125 = por %p123, %p124
    %p126 = scmp.ne.s32.totalorder %s114, %s115
    %p127 = scmp.eq.s32.totalorder %s23, 3
    %p128 = por %p126, %p127
    %p130 = scmp.ne.s32.totalorder %s115, %s129
    %p131 = scmp.eq.s32.totalorder %s23, 0
    %p132 = por %p130, %p131
    %s134 = sadd.s32 %s133, 1
    %p137 = scmp.eq.s32.totalorder %s17, 3
    %p138 = scmp.ne.s32.totalorder %s133, %s135
    %p139 = scmp.eq.s32.totalorder %s17, 0
    %p140 = por %p138, %p139
    %p141 = scmp.ne.s32.totalorder %s133, %s135
    %p142 = scmp.eq.s32.totalorder %s22, 3
    %p143 = por %p141, %p142
    %p144 = scmp.ne.s32.totalorder %s135, %s136
    %p145 = scmp.eq.s32.totalorder %s22, 0
    %p146 = por %p144, %p145
    %p147 = scmp.ne.s32.totalorder %s135, %s136
    %p148 = scmp.eq.s32.totalorder %s23, 3
    %p149 = por %p147, %p148
    %p151 = scmp.ne.s32.totalorder %s136, %s150
    %p152 = scmp.eq.s32.totalorder %s23, 0
    %p153 = por %p151, %p152
    %s155 = sadd.s32 %s154, 1
    %p158 = scmp.eq.s32.totalorder %s17, 3
    %p159 = scmp.ne.s32.totalorder %s154, %s156
    %p160 = scmp.eq.s32.totalorder %s17, 0
    %p161 = por %p159, %p160
    %p162 = scmp.ne.s32.totalorder %s154, %s156
    %p163 = scmp.eq.s32.totalorder %s22, 3
    %p164 = por %p162, %p163
    %p165 = scmp.ne.s32.totalorder %s156, %s157
    %p166 = scmp.eq.s32.totalorder %s22, 0
    %p167 = por %p165, %p166
    %p168 = scmp.ne.s32.totalorder %s156, %s157
    %p169 = scmp.eq.s32.totalorder %s23, 3
    %p170 = por %p168, %p169
    %p172 = scmp.ne.s32.totalorder %s157, %s171
    %p173 = scmp.eq.s32.totalorder %s23, 0
    %p174 = por %p172, %p173
    %s176 = sadd.s32 %s175, 1
    %p179 = scmp.eq.s32.totalorder %s17, 3
    %p180 = scmp.ne.s32.totalorder %s175, %s177
    %p181 = scmp.eq.s32.totalorder %s17, 0
    %p182 = por %p180, %p181
    %p183 = scmp.ne.s32.totalorder %s175, %s177
    %p184 = scmp.eq.s32.totalorder %s22, 3
    %p185 = por %p183, %p184
    %p186 = scmp.ne.s32.totalorder %s177, %s178
    %p187 = scmp.eq.s32.totalorder %s22, 0
    %p188 = por %p186, %p187
    %p189 = scmp.ne.s32.totalorder %s177, %s178
    %p190 = scmp.eq.s32.totalorder %s23, 3
    %p191 = por %p189, %p190
    %p193 = scmp.ne.s32.totalorder %s178, %s192
    %p194 = scmp.eq.s32.totalorder %s23, 0
    %p195 = por %p193, %p194
    %s197 = sadd.s32 %s196, 1
    %p200 = scmp.eq.s32.totalorder %s17, 3
    %p201 = scmp.ne.s32.totalorder %s196, %s198
    %p202 = scmp.eq.s32.totalorder %s17, 0
    %p203 = por %p201, %p202
    %p204 = scmp.ne.s32.totalorder %s196, %s198
    %p205 = scmp.eq.s32.totalorder %s22, 3
    %p206 = por %p204, %p205
    %p207 = scmp.ne.s32.totalorder %s198, %s199
    %p208 = scmp.eq.s32.totalorder %s22, 0
    %p209 = por %p207, %p208
    %p210 = scmp.ne.s32.totalorder %s198, %s199
    %p211 = scmp.eq.s32.totalorder %s23, 3
    %p212 = por %p210, %p211
    %p214 = scmp.ne.s32.totalorder %s199, %s213
    %p215 = scmp.eq.s32.totalorder %s23, 0
    %p216 = por %p214, %p215
    %s218 = sadd.s32 %s217, 1
    %p221 = scmp.eq.s32.totalorder %s17, 3
    %p222 = scmp.ne.s32.totalorder %s217, %s219
    %p223 = scmp.eq.s32.totalorder %s17, 0
    %p224 = por %p222, %p223
    %p225 = scmp.ne.s32.totalorder %s217, %s219
    %p226 = scmp.eq.s32.totalorder %s22, 3
    %p227 = por %p225, %p226
    %p228 = scmp.ne.s32.totalorder %s219, %s220
    %p229 = scmp.eq.s32.totalorder %s22, 0
    %p230 = por %p228, %p229
    %p231 = scmp.ne.s32.totalorder %s219, %s220
    %p232 = scmp.eq.s32.totalorder %s23, 3
    %p233 = por %p231, %p232
    %p235 = scmp.ne.s32.totalorder %s220, %s234
    %p236 = scmp.eq.s32.totalorder %s23, 0
    %p237 = por %p235, %p236
    %s239 = sadd.s32 %s238, 1
    %p242 = scmp.eq.s32.totalorder %s17, 3
    %p243 = scmp.ne.s32.totalorder %s238, %s240
    %p244 = scmp.eq.s32.totalorder %s17, 0
    %p245 = por %p243, %p244
    %p246 = scmp.ne.s32.totalorder %s238, %s240
    %p247 = scmp.eq.s32.totalorder %s22, 3
    %p248 = por %p246, %p247
    %p249 = scmp.ne.s32.totalorder %s240, %s241
    %p250 = scmp.eq.s32.totalorder %s22, 0
    %p251 = por %p249, %p250
    %p252 = scmp.ne.s32.totalorder %s240, %s241
    %p253 = scmp.eq.s32.totalorder %s23, 3
    %p254 = por %p252, %p253
    %p256 = scmp.ne.s32.totalorder %s241, %s255
    %p257 = scmp.eq.s32.totalorder %s23, 0
    %p258 = por %p256, %p257
    %s260 = sadd.s32 %s259, 1
    %p263 = scmp.eq.s32.totalorder %s17, 3
    %p264 = scmp.ne.s32.totalorder %s259, %s261
    %p265 = scmp.eq.s32.totalorder %s17, 0
    %p266 = por %p264, %p265
    %p267 = scmp.ne.s32.totalorder %s259, %s261
    %p268 = scmp.eq.s32.totalorder %s22, 3
    %p269 = por %p267, %p268
    %p270 = scmp.ne.s32.totalorder %s261, %s262
    %p271 = scmp.eq.s32.totalorder %s22, 0
    %p272 = por %p270, %p271
    %p273 = scmp.ne.s32.totalorder %s261, %s262
    %p274 = scmp.eq.s32.totalorder %s23, 3
    %p275 = por %p273, %p274
    %p277 = scmp.ne.s32.totalorder %s262, %s276
    %p278 = scmp.eq.s32.totalorder %s23, 0
    %p279 = por %p277, %p278
    %s280 = ssub.s32 %s24, %s36
    %p281 = scmp.eq.s32.totalorder %s280, 0
    %s283 = sadd.s32 %s282, 1
    %s284 = scalar_select %p281, %s282, %s283
    %p287 = pneg %p281
    %p288 = scmp.eq.s32.totalorder %s17, 3
    %p289 = por %p287, %p288
    %p290 = scmp.ne.s32.totalorder %s282, %s285
    %p291 = scmp.eq.s32.totalorder %s17, 0
    %p292 = por %p290, %p291
    %p293 = scmp.ne.s32.totalorder %s282, %s285
    %p294 = scmp.eq.s32.totalorder %s22, 3
    %p295 = por %p293, %p294
    %p296 = scmp.ne.s32.totalorder %s285, %s286
    %p297 = scmp.eq.s32.totalorder %s22, 0
    %p298 = por %p296, %p297
    %p299 = scmp.ne.s32.totalorder %s285, %s286
    %p300 = scmp.eq.s32.totalorder %s23, 3
    %p301 = por %p299, %p300
    %p303 = scmp.ne.s32.totalorder %s286, %s302
    %p304 = scmp.eq.s32.totalorder %s23, 0
    %p305 = por %p303, %p304
    %p306 = scmp.le.s32.totalorder 1, %s17
    %p307 = scmp.lt.s32.totalorder %s17, 5
    %p308 = pnand %p306, %p307
    %p309 = pneg %p308
    // Predicated region
    $region9: #{ggru_forward.1} parent=5 // pred_check
      _
    $region10: #{ggru_forward.1} parent=5 // pred_check_branch
      %311 = sbr.rel (%p308) target = $region12
    $region11: #{ggru_forward.1} parent=5 // pred_region
      %s312 = ssub.s32 %s17, 1
      // Predicated region
      $region13: #{ggru_forward.1} parent=11 // pred_check
        %p313 = pneg %p104
      $region14: #{ggru_forward.1} parent=11 // pred_check_branch
        %315 = sbr.rel (%p313) target = $region16
      $region15: #{ggru_forward.1} parent=11 // pred_region
        _
      $region16: #{ggru_forward.1} parent=11 // pred_fallthru
        _
      // Predicated region
      $region17: #{ggru_forward.1} parent=11 // pred_check
        %p316 = pneg %p125
      $region18: #{ggru_forward.1} parent=11 // pred_check_branch
        %318 = sbr.rel (%p316) target = $region20
      $region19: #{ggru_forward.1} parent=11 // pred_region
        _
      $region20: #{ggru_forward.1} parent=11 // pred_fallthru
        _
      // Predicated region
      $region21: #{ggru_forward.1} parent=11 // pred_check
        %p319 = pneg %p146
      $region22: #{ggru_forward.1} parent=11 // pred_check_branch
        %321 = sbr.rel (%p319) target = $region24
      $region23: #{ggru_forward.1} parent=11 // pred_region
        _
      $region24: #{ggru_forward.1} parent=11 // pred_fallthru
        _
      // Predicated region
      $region25: #{ggru_forward.1} parent=11 // pred_check
        %p322 = pneg %p167
      $region26: #{ggru_forward.1} parent=11 // pred_check_branch
        %324 = sbr.rel (%p322) target = $region28
      $region27: #{ggru_forward.1} parent=11 // pred_region
        _
      $region28: #{ggru_forward.1} parent=11 // pred_fallthru
        _
      // Predicated region
      $region29: #{ggru_forward.1} parent=11 // pred_check
        %p325 = pneg %p188
      $region30: #{ggru_forward.1} parent=11 // pred_check_branch
        %327 = sbr.rel (%p325) target = $region32
      $region31: #{ggru_forward.1} parent=11 // pred_region
        _
      $region32: #{ggru_forward.1} parent=11 // pred_fallthru
        _
      // Predicated region
      $region33: #{ggru_forward.1} parent=11 // pred_check
        %p328 = pneg %p209
      $region34: #{ggru_forward.1} parent=11 // pred_check_branch
        %330 = sbr.rel (%p328) target = $region36
      $region35: #{ggru_forward.1} parent=11 // pred_region
        _
      $region36: #{ggru_forward.1} parent=11 // pred_fallthru
        _
      // Predicated region
      $region37: #{ggru_forward.1} parent=11 // pred_check
        %p331 = pneg %p230
      $region38: #{ggru_forward.1} parent=11 // pred_check_branch
        %333 = sbr.rel (%p331) target = $region40
      $region39: #{ggru_forward.1} parent=11 // pred_region
        _
      $region40: #{ggru_forward.1} parent=11 // pred_fallthru
        _
      // Predicated region
      $region41: #{ggru_forward.1} parent=11 // pred_check
        %p334 = pneg %p251
      $region42: #{ggru_forward.1} parent=11 // pred_check_branch
        %336 = sbr.rel (%p334) target = $region44
      $region43: #{ggru_forward.1} parent=11 // pred_region
        _
      $region44: #{ggru_forward.1} parent=11 // pred_fallthru
        _
      // Predicated region
      $region45: #{ggru_forward.1} parent=11 // pred_check
        %p337 = pneg %p272
      $region46: #{ggru_forward.1} parent=11 // pred_check_branch
        %339 = sbr.rel (%p337) target = $region48
      $region47: #{ggru_forward.1} parent=11 // pred_region
        _
      $region48: #{ggru_forward.1} parent=11 // pred_fallthru
        _
    $region12: #{ggru_forward.1} parent=5 // pred_fallthru
      _
    %p340 = scmp.lt.s32.totalorder %s17, 4
    // Predicated region
    $region49: #{ggru_forward.1} parent=5 // pred_check
      %p341 = pneg %p340
    $region50: #{ggru_forward.1} parent=5 // pred_check_branch
      %343 = sbr.rel (%p341) target = $region52
    $region51: #{ggru_forward.1} parent=5 // pred_region
      // Predicated region
      $region53: #{ggru_forward.1} parent=51 // pred_check
        %p344 = pneg %p49
      $region54: #{ggru_forward.1} parent=51 // pred_check_branch
        %346 = sbr.rel (%p344) target = $region56
      $region55: #{ggru_forward.1} parent=51 // pred_region
        %p347 = scmp.lt.s32.totalorder %s24, 3
        %s348 = scalar_select %p347, %s24, 3
        %s349 = smul.addr %s348, 4
        %s350 = smul.addr %s349, 8
        %s351 = scalar_lea.vmem %s0, %s350
      $region56: #{ggru_forward.1} parent=51 // pred_fallthru
        _
      // Predicated region
      $region57: #{ggru_forward.1} parent=51 // pred_check
        %p352 = pneg %p77
      $region58: #{ggru_forward.1} parent=51 // pred_check_branch
        %354 = sbr.rel (%p352) target = $region60
      $region59: #{ggru_forward.1} parent=51 // pred_region
        %p355 = scmp.lt.s32.totalorder %s24, 3
        %s356 = scalar_select %p355, %s24, 3
        %p357 = scmp.lt.s32.totalorder %s25, 0
        %s358 = scalar_select %p357, %s25, 0
        %s359 = sadd.s32 %s358, %s356
        %s360 = smul.addr %s359, 8
        %s361 = scalar_lea.vmem %s1, %s360
      $region60: #{ggru_forward.1} parent=51 // pred_fallthru
        _
    $region52: #{ggru_forward.1} parent=5 // pred_fallthru
      _
    %p362 = scmp.le.s32.totalorder 1, %s17
    %p363 = scmp.lt.s32.totalorder %s17, 5
    %p364 = pnand %p362, %p363
    %p365 = pneg %p364
    // Predicated region
    $region61: #{ggru_forward.1} parent=5 // pred_check
      _
    $region62: #{ggru_forward.1} parent=5 // pred_check_branch
      %367 = sbr.rel (%p364) target = $region64
    $region63: #{ggru_forward.1} parent=5 // pred_region
      %s368 = ssub.s32 %s17, 1
      %p369 = scmp.lt.s32.totalorder %s26, 3
      %s370 = scalar_select %p369, %s26, 3
      %s371 = smul.addr %s370, 4
      %s372 = smul.addr %s371, 8
      %s373 = scalar_lea.vmem %s0, %s372
      %p374 = pneg %p55
      %p375 = pneg %p52
      %p376 = scmp.lt.s32.totalorder %s26, 3
      %s377 = scalar_select %p376, %s26, 3
      %p378 = scmp.lt.s32.totalorder %s27, 0
      %s379 = scalar_select %p378, %s27, 0
      %s380 = sadd.s32 %s379, %s377
      %s381 = smul.addr %s380, 8
      %s382 = scalar_lea.vmem %s1, %s381
      %p383 = pneg %p83
      %p384 = pneg %p80
      %p385 = pneg %p104
      %p386 = pneg %p101
      %p387 = pneg %p125
      %p388 = pneg %p122
      %p389 = pneg %p146
      %p390 = pneg %p143
      %p391 = pneg %p167
      %p392 = pneg %p164
      %p393 = pneg %p188
      %p394 = pneg %p185
      %p395 = pneg %p209
      %p396 = pneg %p206
      %p397 = pneg %p230
      %p398 = pneg %p227
      %p399 = pneg %p251
      %p400 = pneg %p248
      %p401 = pneg %p272
      %p402 = pneg %p269
      %p403 = pneg %p298
      %p404 = pneg %p295
      %p405 = scmp.lt.s32.totalorder %s26, 3
      %s406 = scalar_select %p405, %s26, 3
      %s407 = smul.addr %s406, 4
      %s408 = smul.addr %s407, 8
      %s409 = scalar_lea.vmem %s11, %s408
      %p410 = scmp.lt.s32.totalorder %s26, 3
      %s411 = scalar_select %p410, %s26, 3
      %s412 = smul.addr %s411, 4
      %s413 = smul.addr %s412, 8
      %s414 = scalar_lea.vmem %s0, %s413
      %p415 = scmp.lt.s32.totalorder %s26, 3
      %s416 = scalar_select %p415, %s26, 3
      %p417 = scmp.lt.s32.totalorder %s27, 0
      %s418 = scalar_select %p417, %s27, 0
      %s419 = sadd.s32 %s418, %s416
      %s420 = smul.addr %s419, 8
      %s421 = scalar_lea.vmem %s1, %s420
      %p422 = scmp.lt.s32.totalorder %s26, 3
      %s423 = scalar_select %p422, %s26, 3
      %s424 = smul.addr %s423, 4
      %s425 = smul.addr %s424, 8
      %s426 = scalar_lea.vmem %s11, %s425
      %p427 = scmp.eq.s32.totalorder %s27, 0
      // Predicated region
      $region65: #{ggru_forward.1} parent=63 // pred_check
        %p428 = pneg %p427
      $region66: #{ggru_forward.1} parent=63 // pred_check_branch
        %430 = sbr.rel (%p428) target = $region68
      $region67: #{ggru_forward.1} parent=63 // pred_region
        %431 = vst [vmem:[#allocation2] sm:$0xff] 0.0
        %432 = vst [vmem:[#allocation2 + $0x8] sm:$0xff] 0.0
        %433 = vst [vmem:[#allocation2 + $0x10] sm:$0xff] 0.0
        %434 = vst [vmem:[#allocation2 + $0x18] sm:$0xff] 0.0
        %435 = vst [vmem:[#allocation2 + $0x20] sm:$0xff] 0.0
        %436 = vst [vmem:[#allocation2 + $0x28] sm:$0xff] 0.0
        %437 = vst [vmem:[#allocation2 + $0x30] sm:$0xff] 0.0
        %438 = vst [vmem:[#allocation2 + $0x38] sm:$0xff] 0.0
        %439 = vst [vmem:[#allocation2 + $0x40] sm:$0xff] 0.0
        %440 = vst [vmem:[#allocation2 + $0x48] sm:$0xff] 0.0
        %441 = vst [vmem:[#allocation2 + $0x50] sm:$0xff] 0.0
        %442 = vst [vmem:[#allocation2 + $0x58] sm:$0xff] 0.0
        %443 = vst [vmem:[#allocation2 + $0x60] sm:$0xff] 0.0
        %444 = vst [vmem:[#allocation2 + $0x68] sm:$0xff] 0.0
        %445 = vst [vmem:[#allocation2 + $0x70] sm:$0xff] 0.0
        %446 = vst [vmem:[#allocation2 + $0x78] sm:$0xff] 0.0
      $region68: #{ggru_forward.1} parent=63 // pred_fallthru
        _
      %s447 = smul.u32 %s27, 32
      %s448 = scalar_lea.vmem %s414, %s447
      %v449 = vld [vmem:[%s448] sm:$0xff]
      %v450 = vld [vmem:[%s448 + $0x8] sm:$0xff]
      %v451 = vld [vmem:[%s448 + $0x10] sm:$0xff]
      %v452 = vld [vmem:[%s448 + $0x18] sm:$0xff]
      %v453 = vld [vmem:[%s2] sm:$0xff]
      %v454 = vld [vmem:[%s2 + $0x8] sm:$0xff]
      %v455 = vld [vmem:[%s2 + $0x10] sm:$0xff]
      %v456 = vld [vmem:[%s2 + $0x18] sm:$0xff]
      %v457 = vld [vmem:[%s2 + $0x20] sm:$0xff]
      %v458 = vld [vmem:[%s2 + $0x28] sm:$0xff]
      %v459 = vld [vmem:[%s2 + $0x30] sm:$0xff]
      %v460 = vld [vmem:[%s2 + $0x38] sm:$0xff]
      %v461 = vld [vmem:[%s3] sm:$0xf]
      %v463 = vlaneseq
      %v464 = vshrl.u32 %v463, 7
      %v465 = vsub.s32 0, %v464
      %v466 = vrot.slane %v461, %v465
      %v467 = vlaneseq
      %v468 = vshrl.u32 %v467, 7
      %v469 = vsub.s32 1, %v468
      %v470 = vrot.slane %v461, %v469
      %v471 = vlaneseq
      %v472 = vshrl.u32 %v471, 7
      %v473 = vsub.s32 2, %v472
      %v474 = vrot.slane %v461, %v473
      %v475 = vlaneseq
      %v476 = vshrl.u32 %v475, 7
      %v477 = vsub.s32 3, %v476
      %v478 = vrot.slane %v461, %v477
      %vm483 = vcmask 130048
      %v485 = vsel %vm483, %v449, 0
      %v488 = vsel %vm483, %v450, 0
      %v491 = vsel %vm483, %v451, 0
      %v494 = vsel %vm483, %v452, 0
      %496 = vmatprep.subr.mxu0 0.0
      %497 = vmatpush1.msra.mxu0 0.0
      %498 = vmatprep.subr.mxu0 0.0
      %499 = vmatpush1.msra.mxu0 0.0
      %500 = vmatprep.subr.mxu0 0.0
      %501 = vmatpush1.msra.mxu0 0.0
      %502 = vmatprep.subr.mxu0 0.0
      %503 = vmatpush1.msra.mxu0 0.0
      %504 = vmatprep.subr.mxu0 0.0
      %505 = vmatpush1.msra.mxu0 0.0
      %506 = vmatprep.subr.mxu0 0.0
      %507 = vmatpush1.msra.mxu0 0.0
      %508 = vmatprep.subr.mxu0 0.0
      %509 = vmatpush1.msra.mxu0 0.0
      %510 = vmatprep.subr.mxu0 0.0
      %511 = vmatpush1.msra.mxu0 0.0
      %512 = vmatprep.subr.mxu0 0.0
      %513 = vmatpush1.msra.mxu0 0.0
      %514 = vmatprep.subr.mxu0 0.0
      %515 = vmatpush1.msra.mxu0 0.0
      %516 = vmatprep.subr.mxu0 0.0
      %517 = vmatpush1.msra.mxu0 0.0
      %518 = vmatprep.subr.mxu0 0.0
      %519 = vmatpush1.msra.mxu0 0.0
      %520 = vmatprep.subr.mxu0 0.0
      %521 = vmatpush1.msra.mxu0 0.0
      %522 = vmatprep.subr.mxu0 0.0
      %523 = vmatpush1.msra.mxu0 0.0
      %524 = vmatprep.subr.mxu0 %v458
      %525 = vmatpush1.msra.mxu0 %v457
      %526 = vmatprep.subr.mxu0 %v454
      %527 = vmatpush1.msra.mxu0 %v453
      %528 = vmatprep.subr.mxu0 0.0
      %529 = vmatpush2.msra.mxu0 0.0
      %530 = vmatprep.subr.mxu0 0.0
      %531 = vmatpush2.msra.mxu0 0.0
      %532 = vmatprep.subr.mxu0 0.0
      %533 = vmatpush2.msra.mxu0 0.0
      %534 = vmatprep.subr.mxu0 0.0
      %535 = vmatpush2.msra.mxu0 0.0
      %536 = vmatprep.subr.mxu0 0.0
      %537 = vmatpush2.msra.mxu0 0.0
      %538 = vmatprep.subr.mxu0 0.0
      %539 = vmatpush2.msra.mxu0 0.0
      %540 = vmatprep.subr.mxu0 0.0
      %541 = vmatpush2.msra.mxu0 0.0
      %542 = vmatprep.subr.mxu0 0.0
      %543 = vmatpush2.msra.mxu0 0.0
      %544 = vmatprep.subr.mxu0 0.0
      %545 = vmatpush2.msra.mxu0 0.0
      %546 = vmatprep.subr.mxu0 0.0
      %547 = vmatpush2.msra.mxu0 0.0
      %548 = vmatprep.subr.mxu0 0.0
      %549 = vmatpush2.msra.mxu0 0.0
      %550 = vmatprep.subr.mxu0 0.0
      %551 = vmatpush2.msra.mxu0 0.0
      %552 = vmatprep.subr.mxu0 0.0
      %553 = vmatpush2.msra.mxu0 0.0
      %554 = vmatprep.subr.mxu0 0.0
      %555 = vmatpush2.msra.mxu0 0.0
      %556 = vmatprep.subr.mxu0 0.0
      %557 = vmatpush2.msra.mxu0 0.0
      %558 = vmatprep.subr.mxu0 0.0
      %559 = vmatpush2.msra.mxu0 0.0
      %560 = vmatprep.mubr.f32.mxu0 0.0
      %561 = vmatmul.mubr.f32.gmra.mxu0 %v485
      %v562 = vpop.f32.mrf.mxu0
      %v563 = vadd.f32 %v466, %v562
      %v564 = vpop.f32.mrf.mxu0
      %v565 = vadd.f32 %v470, %v564
      %566 = vmatprep.mubr.f32.mxu0 0.0
      %567 = vmatmul.mubr.f32.gmra.mxu0 %v488
      %v568 = vpop.f32.mrf.mxu0
      %v569 = vadd.f32 %v466, %v568
      %v570 = vpop.f32.mrf.mxu0
      %v571 = vadd.f32 %v470, %v570
      %572 = vmatprep.mubr.f32.mxu0 0.0
      %573 = vmatmul.mubr.f32.gmra.mxu0 %v491
      %v574 = vpop.f32.mrf.mxu0
      %v575 = vadd.f32 %v466, %v574
      %v576 = vpop.f32.mrf.mxu0
      %v577 = vadd.f32 %v470, %v576
      %578 = vmatprep.mubr.f32.mxu0 0.0
      %579 = vmatmul.mubr.f32.gmra.mxu0 %v494
      %v580 = vpop.f32.mrf.mxu0
      %v581 = vadd.f32 %v466, %v580
      %v582 = vpop.f32.mrf.mxu0
      %v583 = vadd.f32 %v470, %v582
      %584 = vdwg.mxu0
      %585 = vmatprep.subr.mxu0 0.0
      %586 = vmatpush1.msra.mxu0 0.0
      %587 = vmatprep.subr.mxu0 0.0
      %588 = vmatpush1.msra.mxu0 0.0
      %589 = vmatprep.subr.mxu0 0.0
      %590 = vmatpush1.msra.mxu0 0.0
      %591 = vmatprep.subr.mxu0 0.0
      %592 = vmatpush1.msra.mxu0 0.0
      %593 = vmatprep.subr.mxu0 0.0
      %594 = vmatpush1.msra.mxu0 0.0
      %595 = vmatprep.subr.mxu0 0.0
      %596 = vmatpush1.msra.mxu0 0.0
      %597 = vmatprep.subr.mxu0 0.0
      %598 = vmatpush1.msra.mxu0 0.0
      %599 = vmatprep.subr.mxu0 0.0
      %600 = vmatpush1.msra.mxu0 0.0
      %601 = vmatprep.subr.mxu0 0.0
      %602 = vmatpush1.msra.mxu0 0.0
      %603 = vmatprep.subr.mxu0 0.0
      %604 = vmatpush1.msra.mxu0 0.0
      %605 = vmatprep.subr.mxu0 0.0
      %606 = vmatpush1.msra.mxu0 0.0
      %607 = vmatprep.subr.mxu0 0.0
      %608 = vmatpush1.msra.mxu0 0.0
      %609 = vmatprep.subr.mxu0 0.0
      %610 = vmatpush1.msra.mxu0 0.0
      %611 = vmatprep.subr.mxu0 0.0
      %612 = vmatpush1.msra.mxu0 0.0
      %613 = vmatprep.subr.mxu0 %v460
      %614 = vmatpush1.msra.mxu0 %v459
      %615 = vmatprep.subr.mxu0 %v456
      %616 = vmatpush1.msra.mxu0 %v455
      %617 = vmatprep.subr.mxu0 0.0
      %618 = vmatpush2.msra.mxu0 0.0
      %619 = vmatprep.subr.mxu0 0.0
      %620 = vmatpush2.msra.mxu0 0.0
      %621 = vmatprep.subr.mxu0 0.0
      %622 = vmatpush2.msra.mxu0 0.0
      %623 = vmatprep.subr.mxu0 0.0
      %624 = vmatpush2.msra.mxu0 0.0
      %625 = vmatprep.subr.mxu0 0.0
      %626 = vmatpush2.msra.mxu0 0.0
      %627 = vmatprep.subr.mxu0 0.0
      %628 = vmatpush2.msra.mxu0 0.0
      %629 = vmatprep.subr.mxu0 0.0
      %630 = vmatpush2.msra.mxu0 0.0
      %631 = vmatprep.subr.mxu0 0.0
      %632 = vmatpush2.msra.mxu0 0.0
      %633 = vmatprep.subr.mxu0 0.0
      %634 = vmatpush2.msra.mxu0 0.0
      %635 = vmatprep.subr.mxu0 0.0
      %636 = vmatpush2.msra.mxu0 0.0
      %637 = vmatprep.subr.mxu0 0.0
      %638 = vmatpush2.msra.mxu0 0.0
      %639 = vmatprep.subr.mxu0 0.0
      %640 = vmatpush2.msra.mxu0 0.0
      %641 = vmatprep.subr.mxu0 0.0
      %642 = vmatpush2.msra.mxu0 0.0
      %643 = vmatprep.subr.mxu0 0.0
      %644 = vmatpush2.msra.mxu0 0.0
      %645 = vmatprep.subr.mxu0 0.0
      %646 = vmatpush2.msra.mxu0 0.0
      %647 = vmatprep.subr.mxu0 0.0
      %648 = vmatpush2.msra.mxu0 0.0
      %649 = vmatprep.mubr.f32.mxu0 0.0
      %650 = vmatmul.mubr.f32.gmra.mxu0 %v485
      %v651 = vpop.f32.mrf.mxu0
      %v652 = vadd.f32 %v474, %v651
      %v653 = vpop.f32.mrf.mxu0
      %v654 = vadd.f32 %v478, %v653
      %655 = vmatprep.mubr.f32.mxu0 0.0
      %656 = vmatmul.mubr.f32.gmra.mxu0 %v488
      %v657 = vpop.f32.mrf.mxu0
      %v658 = vadd.f32 %v474, %v657
      %v659 = vpop.f32.mrf.mxu0
      %v660 = vadd.f32 %v478, %v659
      %661 = vmatprep.mubr.f32.mxu0 0.0
      %662 = vmatmul.mubr.f32.gmra.mxu0 %v491
      %v663 = vpop.f32.mrf.mxu0
      %v664 = vadd.f32 %v474, %v663
      %v665 = vpop.f32.mrf.mxu0
      %v666 = vadd.f32 %v478, %v665
      %667 = vmatprep.mubr.f32.mxu0 0.0
      %668 = vmatmul.mubr.f32.gmra.mxu0 %v494
      %v669 = vpop.f32.mrf.mxu0
      %v670 = vadd.f32 %v474, %v669
      %v671 = vpop.f32.mrf.mxu0
      %v672 = vadd.f32 %v478, %v671
      %673 = vdwg.mxu0
      %v674 = vld [vmem:[%s421] sm:$0xff]
      %v675 = vunpack.c.0.s8 %v674
      %v676 = vunpack.c.1.s8 %v674
      %v677 = vunpack.c.2.s8 %v674
      %v678 = vunpack.c.3.s8 %v674
      %v679 = vcvt.s32.f32 %v675
      %v680 = vcvt.s32.f32 %v676
      %v681 = vcvt.s32.f32 %v677
      %v682 = vcvt.s32.f32 %v678
      %vm683 = vcmask 261120
      %v684 = vsel %vm683, %v679, 0.0
      %v685 = vsel %vm683, %v680, 0.0
      %v686 = vadd.f32 %v684, %v685
      %v687 = vsel %vm683, %v681, 0.0
      %v688 = vadd.f32 %v686, %v687
      %v689 = vsel %vm683, %v682, 0.0
      %v690 = vadd.f32 %v688, %v689
      %v691 = vrot.slane %v690, 4
      %v692 = vadd.f32 %v690, %v691
      %v693 = vrot.slane %v692, 2
      %v694 = vadd.f32 %v692, %v693
      %v695 = vrot.slane %v694, 1
      %v696 = vadd.f32 %v694, %v695
      %698 = vbcast.lane.b32.xlu0 %v696, 256
      %v699 = vpop.permute.xlu0 %698
      %s701 = sor.u32 256, 8
      %702 = vbcast.lane.b32.xlu0 %v696, %s701
      %v703 = vpop.permute.xlu0 %702
      %s705 = sor.u32 256, 16
      %706 = vbcast.lane.b32.xlu0 %v696, %s705
      %v707 = vpop.permute.xlu0 %706
      %s709 = sor.u32 256, 24
      %710 = vbcast.lane.b32.xlu0 %v696, %s709
      %v711 = vpop.permute.xlu0 %710
      %s712 = scalar_lea.vmem [#allocation3], %s447
      %vm713 = vcmask 7168
      %714 = vst.msk [vmem:[%s712] sm:$0xff] %vm713, %v699
      %715 = vst.msk [vmem:[%s712 + $0x8] sm:$0xff] %vm713, %v703
      %716 = vst.msk [vmem:[%s712 + $0x10] sm:$0xff] %vm713, %v707
      %717 = vst.msk [vmem:[%s712 + $0x18] sm:$0xff] %vm713, %v711
      %v718 = vld [vmem:[#allocation2] sm:$0xff]
      %v719 = vld [vmem:[#allocation2 + $0x8] sm:$0xff]
      %v720 = vld [vmem:[#allocation2 + $0x10] sm:$0xff]
      %v721 = vld [vmem:[#allocation2 + $0x18] sm:$0xff]
      %v722 = vld [vmem:[#allocation2 + $0x20] sm:$0xff]
      %v723 = vld [vmem:[#allocation2 + $0x28] sm:$0xff]
      %v724 = vld [vmem:[#allocation2 + $0x30] sm:$0xff]
      %v725 = vld [vmem:[#allocation2 + $0x38] sm:$0xff]
      %v726 = vld [vmem:[#allocation2 + $0x40] sm:$0xff]
      %v727 = vld [vmem:[#allocation2 + $0x48] sm:$0xff]
      %v728 = vld [vmem:[#allocation2 + $0x50] sm:$0xff]
      %v729 = vld [vmem:[#allocation2 + $0x58] sm:$0xff]
      %v730 = vld [vmem:[#allocation2 + $0x60] sm:$0xff]
      %v731 = vld [vmem:[#allocation2 + $0x68] sm:$0xff]
      %v732 = vld [vmem:[#allocation2 + $0x70] sm:$0xff]
      %v733 = vld [vmem:[#allocation2 + $0x78] sm:$0xff]
      %v735 = vsel %vm683, %v679, 0
      %v738 = vsel %vm683, %v680, 0
      %v741 = vsel %vm683, %v681, 0
      %v744 = vsel %vm683, %v682, 0
      %746 = vmatprep.subr.mxu0 0.0
      %747 = vmatpush1.msra.mxu0 0.0
      %748 = vmatprep.subr.mxu0 0.0
      %749 = vmatpush1.msra.mxu0 0.0
      %750 = vmatprep.subr.mxu0 0.0
      %751 = vmatpush1.msra.mxu0 0.0
      %752 = vmatprep.subr.mxu0 0.0
      %753 = vmatpush1.msra.mxu0 0.0
      %754 = vmatprep.subr.mxu0 0.0
      %755 = vmatpush1.msra.mxu0 0.0
      %756 = vmatprep.subr.mxu0 0.0
      %757 = vmatpush1.msra.mxu0 0.0
      %758 = vmatprep.subr.mxu0 0.0
      %759 = vmatpush1.msra.mxu0 0.0
      %760 = vmatprep.subr.mxu0 0.0
      %761 = vmatpush1.msra.mxu0 0.0
      %762 = vmatprep.subr.mxu0 0.0
      %763 = vmatpush1.msra.mxu0 0.0
      %764 = vmatprep.subr.mxu0 0.0
      %765 = vmatpush1.msra.mxu0 0.0
      %766 = vmatprep.subr.mxu0 0.0
      %767 = vmatpush1.msra.mxu0 0.0
      %768 = vmatprep.subr.mxu0 0.0
      %769 = vmatpush1.msra.mxu0 0.0
      %770 = vmatprep.subr.mxu0 %v583
      %771 = vmatpush1.msra.mxu0 %v581
      %772 = vmatprep.subr.mxu0 %v577
      %773 = vmatpush1.msra.mxu0 %v575
      %774 = vmatprep.subr.mxu0 %v571
      %775 = vmatpush1.msra.mxu0 %v569
      %776 = vmatprep.subr.mxu0 %v565
      %777 = vmatpush1.msra.mxu0 %v563
      %778 = vmatprep.subr.mxu0 0.0
      %779 = vmatpush2.msra.mxu0 0.0
      %780 = vmatprep.subr.mxu0 0.0
      %781 = vmatpush2.msra.mxu0 0.0
      %782 = vmatprep.subr.mxu0 0.0
      %783 = vmatpush2.msra.mxu0 0.0
      %784 = vmatprep.subr.mxu0 0.0
      %785 = vmatpush2.msra.mxu0 0.0
      %786 = vmatprep.subr.mxu0 0.0
      %787 = vmatpush2.msra.mxu0 0.0
      %788 = vmatprep.subr.mxu0 0.0
      %789 = vmatpush2.msra.mxu0 0.0
      %790 = vmatprep.subr.mxu0 0.0
      %791 = vmatpush2.msra.mxu0 0.0
      %792 = vmatprep.subr.mxu0 0.0
      %793 = vmatpush2.msra.mxu0 0.0
      %794 = vmatprep.subr.mxu0 0.0
      %795 = vmatpush2.msra.mxu0 0.0
      %796 = vmatprep.subr.mxu0 0.0
      %797 = vmatpush2.msra.mxu0 0.0
      %798 = vmatprep.subr.mxu0 0.0
      %799 = vmatpush2.msra.mxu0 0.0
      %800 = vmatprep.subr.mxu0 0.0
      %801 = vmatpush2.msra.mxu0 0.0
      %802 = vmatprep.subr.mxu0 0.0
      %803 = vmatpush2.msra.mxu0 0.0
      %804 = vmatprep.subr.mxu0 0.0
      %805 = vmatpush2.msra.mxu0 0.0
      %806 = vmatprep.subr.mxu0 0.0
      %807 = vmatpush2.msra.mxu0 0.0
      %808 = vmatprep.subr.mxu0 0.0
      %809 = vmatpush2.msra.mxu0 0.0
      %810 = vmatprep.mubr.f32.mxu0 0.0
      %811 = vmatmul.mubr.f32.gmra.mxu0 %v735
      %v812 = vpop.f32.mrf.mxu0
      %v813 = vadd.f32 0.0, %v812
      %v814 = vpop.f32.mrf.mxu0
      %v815 = vadd.f32 0.0, %v814
      %816 = vmatprep.mubr.f32.mxu0 0.0
      %817 = vmatmul.mubr.f32.gmra.mxu0 %v738
      %v818 = vpop.f32.mrf.mxu0
      %v819 = vadd.f32 0.0, %v818
      %v820 = vpop.f32.mrf.mxu0
      %v821 = vadd.f32 0.0, %v820
      %822 = vmatprep.mubr.f32.mxu0 0.0
      %823 = vmatmul.mubr.f32.gmra.mxu0 %v741
      %v824 = vpop.f32.mrf.mxu0
      %v825 = vadd.f32 0.0, %v824
      %v826 = vpop.f32.mrf.mxu0
      %v827 = vadd.f32 0.0, %v826
      %828 = vmatprep.mubr.f32.mxu0 0.0
      %829 = vmatmul.mubr.f32.gmra.mxu0 %v744
      %v830 = vpop.f32.mrf.mxu0
      %v831 = vadd.f32 0.0, %v830
      %v832 = vpop.f32.mrf.mxu0
      %v833 = vadd.f32 0.0, %v832
      %834 = vdwg.mxu0
      %835 = vmatprep.subr.mxu0 0.0
      %836 = vmatpush1.msra.mxu0 0.0
      %837 = vmatprep.subr.mxu0 0.0
      %838 = vmatpush1.msra.mxu0 0.0
      %839 = vmatprep.subr.mxu0 0.0
      %840 = vmatpush1.msra.mxu0 0.0
      %841 = vmatprep.subr.mxu0 0.0
      %842 = vmatpush1.msra.mxu0 0.0
      %843 = vmatprep.subr.mxu0 0.0
      %844 = vmatpush1.msra.mxu0 0.0
      %845 = vmatprep.subr.mxu0 0.0
      %846 = vmatpush1.msra.mxu0 0.0
      %847 = vmatprep.subr.mxu0 0.0
      %848 = vmatpush1.msra.mxu0 0.0
      %849 = vmatprep.subr.mxu0 0.0
      %850 = vmatpush1.msra.mxu0 0.0
      %851 = vmatprep.subr.mxu0 0.0
      %852 = vmatpush1.msra.mxu0 0.0
      %853 = vmatprep.subr.mxu0 0.0
      %854 = vmatpush1.msra.mxu0 0.0
      %855 = vmatprep.subr.mxu0 0.0
      %856 = vmatpush1.msra.mxu0 0.0
      %857 = vmatprep.subr.mxu0 0.0
      %858 = vmatpush1.msra.mxu0 0.0
      %859 = vmatprep.subr.mxu0 %v672
      %860 = vmatpush1.msra.mxu0 %v670
      %861 = vmatprep.subr.mxu0 %v666
      %862 = vmatpush1.msra.mxu0 %v664
      %863 = vmatprep.subr.mxu0 %v660
      %864 = vmatpush1.msra.mxu0 %v658
      %865 = vmatprep.subr.mxu0 %v654
      %866 = vmatpush1.msra.mxu0 %v652
      %867 = vmatprep.subr.mxu0 0.0
      %868 = vmatpush2.msra.mxu0 0.0
      %869 = vmatprep.subr.mxu0 0.0
      %870 = vmatpush2.msra.mxu0 0.0
      %871 = vmatprep.subr.mxu0 0.0
      %872 = vmatpush2.msra.mxu0 0.0
      %873 = vmatprep.subr.mxu0 0.0
      %874 = vmatpush2.msra.mxu0 0.0
      %875 = vmatprep.subr.mxu0 0.0
      %876 = vmatpush2.msra.mxu0 0.0
      %877 = vmatprep.subr.mxu0 0.0
      %878 = vmatpush2.msra.mxu0 0.0
      %879 = vmatprep.subr.mxu0 0.0
      %880 = vmatpush2.msra.mxu0 0.0
      %881 = vmatprep.subr.mxu0 0.0
      %882 = vmatpush2.msra.mxu0 0.0
      %883 = vmatprep.subr.mxu0 0.0
      %884 = vmatpush2.msra.mxu0 0.0
      %885 = vmatprep.subr.mxu0 0.0
      %886 = vmatpush2.msra.mxu0 0.0
      %887 = vmatprep.subr.mxu0 0.0
      %888 = vmatpush2.msra.mxu0 0.0
      %889 = vmatprep.subr.mxu0 0.0
      %890 = vmatpush2.msra.mxu0 0.0
      %891 = vmatprep.subr.mxu0 0.0
      %892 = vmatpush2.msra.mxu0 0.0
      %893 = vmatprep.subr.mxu0 0.0
      %894 = vmatpush2.msra.mxu0 0.0
      %895 = vmatprep.subr.mxu0 0.0
      %896 = vmatpush2.msra.mxu0 0.0
      %897 = vmatprep.subr.mxu0 0.0
      %898 = vmatpush2.msra.mxu0 0.0
      %899 = vmatprep.mubr.f32.mxu0 0.0
      %900 = vmatmul.mubr.f32.gmra.mxu0 %v735
      %v901 = vpop.f32.mrf.mxu0
      %v902 = vadd.f32 0.0, %v901
      %v903 = vpop.f32.mrf.mxu0
      %v904 = vadd.f32 0.0, %v903
      %905 = vmatprep.mubr.f32.mxu0 0.0
      %906 = vmatmul.mubr.f32.gmra.mxu0 %v738
      %v907 = vpop.f32.mrf.mxu0
      %v908 = vadd.f32 0.0, %v907
      %v909 = vpop.f32.mrf.mxu0
      %v910 = vadd.f32 0.0, %v909
      %911 = vmatprep.mubr.f32.mxu0 0.0
      %912 = vmatmul.mubr.f32.gmra.mxu0 %v741
      %v913 = vpop.f32.mrf.mxu0
      %v914 = vadd.f32 0.0, %v913
      %v915 = vpop.f32.mrf.mxu0
      %v916 = vadd.f32 0.0, %v915
      %917 = vmatprep.mubr.f32.mxu0 0.0
      %918 = vmatmul.mubr.f32.gmra.mxu0 %v744
      %v919 = vpop.f32.mrf.mxu0
      %v920 = vadd.f32 0.0, %v919
      %v921 = vpop.f32.mrf.mxu0
      %v922 = vadd.f32 0.0, %v921
      %923 = vdwg.mxu0
      %v924 = vadd.f32 %v718, %v813
      %v925 = vadd.f32 %v719, %v815
      %v926 = vadd.f32 %v720, %v902
      %v927 = vadd.f32 %v721, %v904
      %v928 = vadd.f32 %v722, %v819
      %v929 = vadd.f32 %v723, %v821
      %v930 = vadd.f32 %v724, %v908
      %v931 = vadd.f32 %v725, %v910
      %v932 = vadd.f32 %v726, %v825
      %v933 = vadd.f32 %v727, %v827
      %v934 = vadd.f32 %v728, %v914
      %v935 = vadd.f32 %v729, %v916
      %v936 = vadd.f32 %v730, %v831
      %v937 = vadd.f32 %v731, %v833
      %v938 = vadd.f32 %v732, %v920
      %v939 = vadd.f32 %v733, %v922
      %940 = vst [vmem:[#allocation2] sm:$0xff] %v924
      %941 = vst [vmem:[#allocation2 + $0x8] sm:$0xff] %v925
      %942 = vst [vmem:[#allocation2 + $0x10] sm:$0xff] %v926
      %943 = vst [vmem:[#allocation2 + $0x18] sm:$0xff] %v927
      %944 = vst [vmem:[#allocation2 + $0x20] sm:$0xff] %v928
      %945 = vst [vmem:[#allocation2 + $0x28] sm:$0xff] %v929
      %946 = vst [vmem:[#allocation2 + $0x30] sm:$0xff] %v930
      %947 = vst [vmem:[#allocation2 + $0x38] sm:$0xff] %v931
      %948 = vst [vmem:[#allocation2 + $0x40] sm:$0xff] %v932
      %949 = vst [vmem:[#allocation2 + $0x48] sm:$0xff] %v933
      %950 = vst [vmem:[#allocation2 + $0x50] sm:$0xff] %v934
      %951 = vst [vmem:[#allocation2 + $0x58] sm:$0xff] %v935
      %952 = vst [vmem:[#allocation2 + $0x60] sm:$0xff] %v936
      %953 = vst [vmem:[#allocation2 + $0x68] sm:$0xff] %v937
      %954 = vst [vmem:[#allocation2 + $0x70] sm:$0xff] %v938
      %955 = vst [vmem:[#allocation2 + $0x78] sm:$0xff] %v939
      // Predicated region
      $region69: #{ggru_forward.1} parent=63 // pred_check
        %p956 = pneg %p427
      $region70: #{ggru_forward.1} parent=63 // pred_check_branch
        %958 = sbr.rel (%p956) target = $region72
      $region71: #{ggru_forward.1} parent=63 // pred_region
        %v959 = vld [vmem:[#allocation3] sm:$0xff]
        %v960 = vld [vmem:[#allocation3 + $0x8] sm:$0xff]
        %v961 = vld [vmem:[#allocation3 + $0x10] sm:$0xff]
        %v962 = vld [vmem:[#allocation3 + $0x18] sm:$0xff]
        %v963 = vadd.f32 %v959, 1.0
        %v964 = vadd.f32 %v960, 1.0
        %v965 = vadd.f32 %v961, 1.0
        %v966 = vadd.f32 %v962, 1.0
        %v967 = vrcp.pop %v963
        %v968 = vmul.f32 1.0, %v967
        %v969 = vrcp.pop %v964
        %v970 = vmul.f32 1.0, %v969
        %v971 = vrcp.pop %v965
        %v972 = vmul.f32 1.0, %v971
        %v973 = vrcp.pop %v966
        %v974 = vmul.f32 1.0, %v973
        %v975 = vld [vmem:[#allocation2] sm:$0xff]
        %v976 = vld [vmem:[#allocation2 + $0x8] sm:$0xff]
        %v977 = vld [vmem:[#allocation2 + $0x10] sm:$0xff]
        %v978 = vld [vmem:[#allocation2 + $0x18] sm:$0xff]
        %v979 = vld [vmem:[#allocation2 + $0x20] sm:$0xff]
        %v980 = vld [vmem:[#allocation2 + $0x28] sm:$0xff]
        %v981 = vld [vmem:[#allocation2 + $0x30] sm:$0xff]
        %v982 = vld [vmem:[#allocation2 + $0x38] sm:$0xff]
        %v983 = vld [vmem:[#allocation2 + $0x40] sm:$0xff]
        %v984 = vld [vmem:[#allocation2 + $0x48] sm:$0xff]
        %v985 = vld [vmem:[#allocation2 + $0x50] sm:$0xff]
        %v986 = vld [vmem:[#allocation2 + $0x58] sm:$0xff]
        %v987 = vld [vmem:[#allocation2 + $0x60] sm:$0xff]
        %v988 = vld [vmem:[#allocation2 + $0x68] sm:$0xff]
        %v989 = vld [vmem:[#allocation2 + $0x70] sm:$0xff]
        %v990 = vld [vmem:[#allocation2 + $0x78] sm:$0xff]
        %992 = vset.pattern.permute.xlu0 0
        %993 = vperm.xlu0 %992, %v968
        %v994 = vpop.permute.xlu0 %993
        %997 = vset.pattern.permute.xlu0 0
        %998 = vperm.xlu0 %997, %v970
        %v999 = vpop.permute.xlu0 %998
        %1002 = vset.pattern.permute.xlu0 0
        %1003 = vperm.xlu0 %1002, %v972
        %v1004 = vpop.permute.xlu0 %1003
        %1007 = vset.pattern.permute.xlu0 0
        %1008 = vperm.xlu0 %1007, %v974
        %v1009 = vpop.permute.xlu0 %1008
        %v1011 = vmul.f32 %v975, %v994
        %v1012 = vmul.f32 %v976, %v994
        %v1013 = vmul.f32 %v977, %v994
        %v1014 = vmul.f32 %v978, %v994
        %v1015 = vmul.f32 %v979, %v999
        %v1016 = vmul.f32 %v980, %v999
        %v1017 = vmul.f32 %v981, %v999
        %v1018 = vmul.f32 %v982, %v999
        %v1019 = vmul.f32 %v983, %v1004
        %v1020 = vmul.f32 %v984, %v1004
        %v1021 = vmul.f32 %v985, %v1004
        %v1022 = vmul.f32 %v986, %v1004
        %v1023 = vmul.f32 %v987, %v1009
        %v1024 = vmul.f32 %v988, %v1009
        %v1025 = vmul.f32 %v989, %v1009
        %v1026 = vmul.f32 %v990, %v1009
        %v1027 = vld [vmem:[%s414] sm:$0xff]
        %v1028 = vld [vmem:[%s414 + $0x8] sm:$0xff]
        %v1029 = vld [vmem:[%s414 + $0x10] sm:$0xff]
        %v1030 = vld [vmem:[%s414 + $0x18] sm:$0xff]
        %v1031 = vld [vmem:[%s4] sm:$0xff]
        %v1032 = vld [vmem:[%s4 + $0x8] sm:$0xff]
        %v1033 = vld [vmem:[%s4 + $0x10] sm:$0xff]
        %v1034 = vld [vmem:[%s4 + $0x18] sm:$0xff]
        %v1035 = vld [vmem:[%s4 + $0x20] sm:$0xff]
        %v1036 = vld [vmem:[%s4 + $0x28] sm:$0xff]
        %v1037 = vld [vmem:[%s5] sm:$0x7]
        %v1039 = vlaneseq
        %v1040 = vshrl.u32 %v1039, 7
        %v1041 = vsub.s32 0, %v1040
        %v1042 = vrot.slane %v1037, %v1041
        %v1043 = vlaneseq
        %v1044 = vshrl.u32 %v1043, 7
        %v1045 = vsub.s32 1, %v1044
        %v1046 = vrot.slane %v1037, %v1045
        %v1047 = vlaneseq
        %v1048 = vshrl.u32 %v1047, 7
        %v1049 = vsub.s32 2, %v1048
        %v1050 = vrot.slane %v1037, %v1049
        %v1055 = vsel %vm483, %v1027, 0
        %v1058 = vsel %vm483, %v1028, 0
        %v1061 = vsel %vm483, %v1029, 0
        %v1064 = vsel %vm483, %v1030, 0
        %1066 = vmatprep.subr.mxu0 0.0
        %1067 = vmatpush1.msra.mxu0 0.0
        %1068 = vmatprep.subr.mxu0 0.0
        %1069 = vmatpush1.msra.mxu0 0.0
        %1070 = vmatprep.subr.mxu0 0.0
        %1071 = vmatpush1.msra.mxu0 0.0
        %1072 = vmatprep.subr.mxu0 0.0
        %1073 = vmatpush1.msra.mxu0 0.0
        %1074 = vmatprep.subr.mxu0 0.0
        %1075 = vmatpush1.msra.mxu0 0.0
        %1076 = vmatprep.subr.mxu0 0.0
        %1077 = vmatpush1.msra.mxu0 0.0
        %1078 = vmatprep.subr.mxu0 0.0
        %1079 = vmatpush1.msra.mxu0 0.0
        %1080 = vmatprep.subr.mxu0 0.0
        %1081 = vmatpush1.msra.mxu0 0.0
        %1082 = vmatprep.subr.mxu0 0.0
        %1083 = vmatpush1.msra.mxu0 0.0
        %1084 = vmatprep.subr.mxu0 0.0
        %1085 = vmatpush1.msra.mxu0 0.0
        %1086 = vmatprep.subr.mxu0 0.0
        %1087 = vmatpush1.msra.mxu0 0.0
        %1088 = vmatprep.subr.mxu0 0.0
        %1089 = vmatpush1.msra.mxu0 0.0
        %1090 = vmatprep.subr.mxu0 0.0
        %1091 = vmatpush1.msra.mxu0 0.0
        %1092 = vmatprep.subr.mxu0 0.0
        %1093 = vmatpush1.msra.mxu0 0.0
        %1094 = vmatprep.subr.mxu0 %v1035
        %1095 = vmatpush1.msra.mxu0 %v1034
        %1096 = vmatprep.subr.mxu0 %v1032
        %1097 = vmatpush1.msra.mxu0 %v1031
        %1098 = vmatprep.subr.mxu0 0.0
        %1099 = vmatpush2.msra.mxu0 0.0
        %1100 = vmatprep.subr.mxu0 0.0
        %1101 = vmatpush2.msra.mxu0 0.0
        %1102 = vmatprep.subr.mxu0 0.0
        %1103 = vmatpush2.msra.mxu0 0.0
        %1104 = vmatprep.subr.mxu0 0.0
        %1105 = vmatpush2.msra.mxu0 0.0
        %1106 = vmatprep.subr.mxu0 0.0
        %1107 = vmatpush2.msra.mxu0 0.0
        %1108 = vmatprep.subr.mxu0 0.0
        %1109 = vmatpush2.msra.mxu0 0.0
        %1110 = vmatprep.subr.mxu0 0.0
        %1111 = vmatpush2.msra.mxu0 0.0
        %1112 = vmatprep.subr.mxu0 0.0
        %1113 = vmatpush2.msra.mxu0 0.0
        %1114 = vmatprep.subr.mxu0 0.0
        %1115 = vmatpush2.msra.mxu0 0.0
        %1116 = vmatprep.subr.mxu0 0.0
        %1117 = vmatpush2.msra.mxu0 0.0
        %1118 = vmatprep.subr.mxu0 0.0
        %1119 = vmatpush2.msra.mxu0 0.0
        %1120 = vmatprep.subr.mxu0 0.0
        %1121 = vmatpush2.msra.mxu0 0.0
        %1122 = vmatprep.subr.mxu0 0.0
        %1123 = vmatpush2.msra.mxu0 0.0
        %1124 = vmatprep.subr.mxu0 0.0
        %1125 = vmatpush2.msra.mxu0 0.0
        %1126 = vmatprep.subr.mxu0 0.0
        %1127 = vmatpush2.msra.mxu0 0.0
        %1128 = vmatprep.subr.mxu0 0.0
        %1129 = vmatpush2.msra.mxu0 0.0
        %1130 = vmatprep.mubr.f32.mxu0 0.0
        %1131 = vmatmul.mubr.f32.gmra.mxu0 %v1055
        %v1132 = vpop.f32.mrf.mxu0
        %v1133 = vadd.f32 %v1042, %v1132
        %v1134 = vpop.f32.mrf.mxu0
        %v1135 = vadd.f32 %v1046, %v1134
        %1136 = vmatprep.mubr.f32.mxu0 0.0
        %1137 = vmatmul.mubr.f32.gmra.mxu0 %v1058
        %v1138 = vpop.f32.mrf.mxu0
        %v1139 = vadd.f32 %v1042, %v1138
        %v1140 = vpop.f32.mrf.mxu0
        %v1141 = vadd.f32 %v1046, %v1140
        %1142 = vmatprep.mubr.f32.mxu0 0.0
        %1143 = vmatmul.mubr.f32.gmra.mxu0 %v1061
        %v1144 = vpop.f32.mrf.mxu0
        %v1145 = vadd.f32 %v1042, %v1144
        %v1146 = vpop.f32.mrf.mxu0
        %v1147 = vadd.f32 %v1046, %v1146
        %1148 = vmatprep.mubr.f32.mxu0 0.0
        %1149 = vmatmul.mubr.f32.gmra.mxu0 %v1064
        %v1150 = vpop.f32.mrf.mxu0
        %v1151 = vadd.f32 %v1042, %v1150
        %v1152 = vpop.f32.mrf.mxu0
        %v1153 = vadd.f32 %v1046, %v1152
        %1154 = vdwg.mxu0
        %1155 = vmatprep.subr.mxu0 0.0
        %1156 = vmatpush1.msra.mxu0 0.0
        %1157 = vmatprep.subr.mxu0 0.0
        %1158 = vmatpush1.msra.mxu0 0.0
        %1159 = vmatprep.subr.mxu0 0.0
        %1160 = vmatpush1.msra.mxu0 0.0
        %1161 = vmatprep.subr.mxu0 0.0
        %1162 = vmatpush1.msra.mxu0 0.0
        %1163 = vmatprep.subr.mxu0 0.0
        %1164 = vmatpush1.msra.mxu0 0.0
        %1165 = vmatprep.subr.mxu0 0.0
        %1166 = vmatpush1.msra.mxu0 0.0
        %1167 = vmatprep.subr.mxu0 0.0
        %1168 = vmatpush1.msra.mxu0 0.0
        %1169 = vmatprep.subr.mxu0 0.0
        %1170 = vmatpush1.msra.mxu0 0.0
        %1171 = vmatprep.subr.mxu0 0.0
        %1172 = vmatpush1.msra.mxu0 0.0
        %1173 = vmatprep.subr.mxu0 0.0
        %1174 = vmatpush1.msra.mxu0 0.0
        %1175 = vmatprep.subr.mxu0 0.0
        %1176 = vmatpush1.msra.mxu0 0.0
        %1177 = vmatprep.subr.mxu0 0.0
        %1178 = vmatpush1.msra.mxu0 0.0
        %1179 = vmatprep.subr.mxu0 0.0
        %1180 = vmatpush1.msra.mxu0 0.0
        %1181 = vmatprep.subr.mxu0 0.0
        %1182 = vmatpush1.msra.mxu0 0.0
        %1183 = vmatprep.subr.mxu0 0.0
        %1184 = vmatpush1.msra.mxu0 %v1036
        %1185 = vmatprep.subr.mxu0 0.0
        %1186 = vmatpush1.msra.mxu0 %v1033
        %1187 = vmatprep.subr.mxu0 0.0
        %1188 = vmatpush2.msra.mxu0 0.0
        %1189 = vmatprep.subr.mxu0 0.0
        %1190 = vmatpush2.msra.mxu0 0.0
        %1191 = vmatprep.subr.mxu0 0.0
        %1192 = vmatpush2.msra.mxu0 0.0
        %1193 = vmatprep.subr.mxu0 0.0
        %1194 = vmatpush2.msra.mxu0 0.0
        %1195 = vmatprep.subr.mxu0 0.0
        %1196 = vmatpush2.msra.mxu0 0.0
        %1197 = vmatprep.subr.mxu0 0.0
        %1198 = vmatpush2.msra.mxu0 0.0
        %1199 = vmatprep.subr.mxu0 0.0
        %1200 = vmatpush2.msra.mxu0 0.0
        %1201 = vmatprep.subr.mxu0 0.0
        %1202 = vmatpush2.msra.mxu0 0.0
        %1203 = vmatprep.subr.mxu0 0.0
        %1204 = vmatpush2.msra.mxu0 0.0
        %1205 = vmatprep.subr.mxu0 0.0
        %1206 = vmatpush2.msra.mxu0 0.0
        %1207 = vmatprep.subr.mxu0 0.0
        %1208 = vmatpush2.msra.mxu0 0.0
        %1209 = vmatprep.subr.mxu0 0.0
        %1210 = vmatpush2.msra.mxu0 0.0
        %1211 = vmatprep.subr.mxu0 0.0
        %1212 = vmatpush2.msra.mxu0 0.0
        %1213 = vmatprep.subr.mxu0 0.0
        %1214 = vmatpush2.msra.mxu0 0.0
        %1215 = vmatprep.subr.mxu0 0.0
        %1216 = vmatpush2.msra.mxu0 0.0
        %1217 = vmatprep.subr.mxu0 0.0
        %1218 = vmatpush2.msra.mxu0 0.0
        %1219 = vmatprep.mubr.f32.mxu0 0.0
        %1220 = vmatmul.mubr.f32.gmra.mxu0 %v1055
        %v1221 = vpop.f32.mrf.mxu0
        %v1222 = vadd.f32 %v1050, %v1221
        %v1223 = vpop.f32.mrf.mxu0
        %1224 = vmatprep.mubr.f32.mxu0 0.0
        %1225 = vmatmul.mubr.f32.gmra.mxu0 %v1058
        %v1226 = vpop.f32.mrf.mxu0
        %v1227 = vadd.f32 %v1050, %v1226
        %v1228 = vpop.f32.mrf.mxu0
        %1229 = vmatprep.mubr.f32.mxu0 0.0
        %1230 = vmatmul.mubr.f32.gmra.mxu0 %v1061
        %v1231 = vpop.f32.mrf.mxu0
        %v1232 = vadd.f32 %v1050, %v1231
        %v1233 = vpop.f32.mrf.mxu0
        %1234 = vmatprep.mubr.f32.mxu0 0.0
        %1235 = vmatmul.mubr.f32.gmra.mxu0 %v1064
        %v1236 = vpop.f32.mrf.mxu0
        %v1237 = vadd.f32 %v1050, %v1236
        %v1238 = vpop.f32.mrf.mxu0
        %1239 = vdwg.mxu0
        %v1240 = vld [vmem:[%s6] sm:$0xff]
        %v1241 = vld [vmem:[%s6 + $0x8] sm:$0xff]
        %v1242 = vld [vmem:[%s6 + $0x10] sm:$0xff]
        %v1243 = vld [vmem:[%s6 + $0x18] sm:$0xff]
        %v1244 = vld [vmem:[%s6 + $0x20] sm:$0xff]
        %v1245 = vld [vmem:[%s6 + $0x28] sm:$0xff]
        %v1246 = vld [vmem:[%s6 + $0x30] sm:$0xff]
        %v1247 = vld [vmem:[%s6 + $0x38] sm:$0xff]
        %v1248 = vld [vmem:[%s6 + $0x40] sm:$0xff]
        %v1249 = vld [vmem:[%s6 + $0x48] sm:$0xff]
        %v1250 = vld [vmem:[%s6 + $0x50] sm:$0xff]
        %v1251 = vld [vmem:[%s6 + $0x58] sm:$0xff]
        %v1252 = vld [vmem:[%s6 + $0x60] sm:$0xff]
        %v1253 = vld [vmem:[%s6 + $0x68] sm:$0xff]
        %v1254 = vld [vmem:[%s6 + $0x70] sm:$0xff]
        %v1255 = vld [vmem:[%s6 + $0x78] sm:$0xff]
        %1256 = vmatprep.subr.mxu0 0.0
        %1257 = vmatpush1.msra.mxu0 %v1255
        %1258 = vmatprep.subr.mxu0 0.0
        %1259 = vmatpush1.msra.mxu0 %v1254
        %1260 = vmatprep.subr.mxu0 0.0
        %1261 = vmatpush1.msra.mxu0 %v1253
        %1262 = vmatprep.subr.mxu0 0.0
        %1263 = vmatpush1.msra.mxu0 %v1252
        %1264 = vmatprep.subr.mxu0 0.0
        %1265 = vmatpush1.msra.mxu0 %v1251
        %1266 = vmatprep.subr.mxu0 0.0
        %1267 = vmatpush1.msra.mxu0 %v1250
        %1268 = vmatprep.subr.mxu0 0.0
        %1269 = vmatpush1.msra.mxu0 %v1249
        %1270 = vmatprep.subr.mxu0 0.0
        %1271 = vmatpush1.msra.mxu0 %v1248
        %1272 = vmatprep.subr.mxu0 0.0
        %1273 = vmatpush1.msra.mxu0 %v1247
        %1274 = vmatprep.subr.mxu0 0.0
        %1275 = vmatpush1.msra.mxu0 %v1246
        %1276 = vmatprep.subr.mxu0 0.0
        %1277 = vmatpush1.msra.mxu0 %v1245
        %1278 = vmatprep.subr.mxu0 0.0
        %1279 = vmatpush1.msra.mxu0 %v1244
        %1280 = vmatprep.subr.mxu0 0.0
        %1281 = vmatpush1.msra.mxu0 %v1243
        %1282 = vmatprep.subr.mxu0 0.0
        %1283 = vmatpush1.msra.mxu0 %v1242
        %1284 = vmatprep.subr.mxu0 0.0
        %1285 = vmatpush1.msra.mxu0 %v1241
        %1286 = vmatprep.subr.mxu0 0.0
        %1287 = vmatpush1.msra.mxu0 %v1240
        %1288 = vmatprep.subr.mxu0 0.0
        %1289 = vmatpush2.msra.mxu0 0.0
        %1290 = vmatprep.subr.mxu0 0.0
        %1291 = vmatpush2.msra.mxu0 0.0
        %1292 = vmatprep.subr.mxu0 0.0
        %1293 = vmatpush2.msra.mxu0 0.0
        %1294 = vmatprep.subr.mxu0 0.0
        %1295 = vmatpush2.msra.mxu0 0.0
        %1296 = vmatprep.subr.mxu0 0.0
        %1297 = vmatpush2.msra.mxu0 0.0
        %1298 = vmatprep.subr.mxu0 0.0
        %1299 = vmatpush2.msra.mxu0 0.0
        %1300 = vmatprep.subr.mxu0 0.0
        %1301 = vmatpush2.msra.mxu0 0.0
        %1302 = vmatprep.subr.mxu0 0.0
        %1303 = vmatpush2.msra.mxu0 0.0
        %1304 = vmatprep.subr.mxu0 0.0
        %1305 = vmatpush2.msra.mxu0 0.0
        %1306 = vmatprep.subr.mxu0 0.0
        %1307 = vmatpush2.msra.mxu0 0.0
        %1308 = vmatprep.subr.mxu0 0.0
        %1309 = vmatpush2.msra.mxu0 0.0
        %1310 = vmatprep.subr.mxu0 0.0
        %1311 = vmatpush2.msra.mxu0 0.0
        %1312 = vmatprep.subr.mxu0 0.0
        %1313 = vmatpush2.msra.mxu0 0.0
        %1314 = vmatprep.subr.mxu0 0.0
        %1315 = vmatpush2.msra.mxu0 0.0
        %1316 = vmatprep.subr.mxu0 0.0
        %1317 = vmatpush2.msra.mxu0 0.0
        %1318 = vmatprep.subr.mxu0 0.0
        %1319 = vmatpush2.msra.mxu0 0.0
        %1320 = vmatprep.mubr.f32.mxu0 0.0
        %1321 = vmatmul.mubr.f32.gmra.mxu0 %v1011
        %v1322 = vpop.f32.mrf.mxu0
        %v1323 = vadd.f32 0.0, %v1322
        %v1324 = vpop.f32.mrf.mxu0
        %1325 = vmatprep.mubr.f32.mxu0 0.0
        %1326 = vmatmul.mubr.f32.gmra.mxu0 %v1015
        %v1327 = vpop.f32.mrf.mxu0
        %v1328 = vadd.f32 0.0, %v1327
        %v1329 = vpop.f32.mrf.mxu0
        %1330 = vmatprep.mubr.f32.mxu0 0.0
        %1331 = vmatmul.mubr.f32.gmra.mxu0 %v1019
        %v1332 = vpop.f32.mrf.mxu0
        %v1333 = vadd.f32 0.0, %v1332
        %v1334 = vpop.f32.mrf.mxu0
        %1335 = vmatprep.mubr.f32.mxu0 0.0
        %1336 = vmatmul.mubr.f32.gmra.mxu0 %v1023
        %v1337 = vpop.f32.mrf.mxu0
        %v1338 = vadd.f32 0.0, %v1337
        %v1339 = vpop.f32.mrf.mxu0
        %1340 = vdwg.mxu0
        %v1341 = vadd.f32 %v1222, %v1323
        %v1342 = vadd.f32 %v1227, %v1328
        %v1343 = vadd.f32 %v1232, %v1333
        %v1344 = vadd.f32 %v1237, %v1338
        %v1345 = vxor.u32 %v1341, 2147483648
        %v1346 = vxor.u32 %v1342, 2147483648
        %v1347 = vxor.u32 %v1343, 2147483648
        %v1348 = vxor.u32 %v1344, 2147483648
        %v1349 = vmul.f32 %v1345, 1.442695
        %v1350 = vpow.pop %v1349
        %v1351 = vmul.f32 %v1346, 1.442695
        %v1352 = vpow.pop %v1351
        %v1353 = vmul.f32 %v1347, 1.442695
        %v1354 = vpow.pop %v1353
        %v1355 = vmul.f32 %v1348, 1.442695
        %v1356 = vpow.pop %v1355
        %v1357 = vadd.f32 %v1350, 1.0
        %v1358 = vadd.f32 %v1352, 1.0
        %v1359 = vadd.f32 %v1354, 1.0
        %v1360 = vadd.f32 %v1356, 1.0
        %v1361 = vrcp.pop %v1357
        %v1362 = vmul.f32 1.0, %v1361
        %v1363 = vrcp.pop %v1358
        %v1364 = vmul.f32 1.0, %v1363
        %v1365 = vrcp.pop %v1359
        %v1366 = vmul.f32 1.0, %v1365
        %v1367 = vrcp.pop %v1360
        %v1368 = vmul.f32 1.0, %v1367
        %v1369 = vld [vmem:[%s7] sm:$0xff]
        %v1370 = vld [vmem:[%s7 + $0x8] sm:$0xff]
        %v1371 = vld [vmem:[%s7 + $0x10] sm:$0xff]
        %v1372 = vld [vmem:[%s7 + $0x18] sm:$0xff]
        %v1373 = vld [vmem:[%s7 + $0x20] sm:$0xff]
        %v1374 = vld [vmem:[%s7 + $0x28] sm:$0xff]
        %v1375 = vld [vmem:[%s7 + $0x30] sm:$0xff]
        %v1376 = vld [vmem:[%s7 + $0x38] sm:$0xff]
        %v1377 = vld [vmem:[%s7 + $0x40] sm:$0xff]
        %v1378 = vld [vmem:[%s7 + $0x48] sm:$0xff]
        %v1379 = vld [vmem:[%s7 + $0x50] sm:$0xff]
        %v1380 = vld [vmem:[%s7 + $0x58] sm:$0xff]
        %v1381 = vld [vmem:[%s7 + $0x60] sm:$0xff]
        %v1382 = vld [vmem:[%s7 + $0x68] sm:$0xff]
        %v1383 = vld [vmem:[%s7 + $0x70] sm:$0xff]
        %v1384 = vld [vmem:[%s7 + $0x78] sm:$0xff]
        %1385 = vmatprep.subr.mxu0 0.0
        %1386 = vmatpush1.msra.mxu0 %v1384
        %1387 = vmatprep.subr.mxu0 0.0
        %1388 = vmatpush1.msra.mxu0 %v1383
        %1389 = vmatprep.subr.mxu0 0.0
        %1390 = vmatpush1.msra.mxu0 %v1382
        %1391 = vmatprep.subr.mxu0 0.0
        %1392 = vmatpush1.msra.mxu0 %v1381
        %1393 = vmatprep.subr.mxu0 0.0
        %1394 = vmatpush1.msra.mxu0 %v1380
        %1395 = vmatprep.subr.mxu0 0.0
        %1396 = vmatpush1.msra.mxu0 %v1379
        %1397 = vmatprep.subr.mxu0 0.0
        %1398 = vmatpush1.msra.mxu0 %v1378
        %1399 = vmatprep.subr.mxu0 0.0
        %1400 = vmatpush1.msra.mxu0 %v1377
        %1401 = vmatprep.subr.mxu0 0.0
        %1402 = vmatpush1.msra.mxu0 %v1376
        %1403 = vmatprep.subr.mxu0 0.0
        %1404 = vmatpush1.msra.mxu0 %v1375
        %1405 = vmatprep.subr.mxu0 0.0
        %1406 = vmatpush1.msra.mxu0 %v1374
        %1407 = vmatprep.subr.mxu0 0.0
        %1408 = vmatpush1.msra.mxu0 %v1373
        %1409 = vmatprep.subr.mxu0 0.0
        %1410 = vmatpush1.msra.mxu0 %v1372
        %1411 = vmatprep.subr.mxu0 0.0
        %1412 = vmatpush1.msra.mxu0 %v1371
        %1413 = vmatprep.subr.mxu0 0.0
        %1414 = vmatpush1.msra.mxu0 %v1370
        %1415 = vmatprep.subr.mxu0 0.0
        %1416 = vmatpush1.msra.mxu0 %v1369
        %1417 = vmatprep.subr.mxu0 0.0
        %1418 = vmatpush2.msra.mxu0 0.0
        %1419 = vmatprep.subr.mxu0 0.0
        %1420 = vmatpush2.msra.mxu0 0.0
        %1421 = vmatprep.subr.mxu0 0.0
        %1422 = vmatpush2.msra.mxu0 0.0
        %1423 = vmatprep.subr.mxu0 0.0
        %1424 = vmatpush2.msra.mxu0 0.0
        %1425 = vmatprep.subr.mxu0 0.0
        %1426 = vmatpush2.msra.mxu0 0.0
        %1427 = vmatprep.subr.mxu0 0.0
        %1428 = vmatpush2.msra.mxu0 0.0
        %1429 = vmatprep.subr.mxu0 0.0
        %1430 = vmatpush2.msra.mxu0 0.0
        %1431 = vmatprep.subr.mxu0 0.0
        %1432 = vmatpush2.msra.mxu0 0.0
        %1433 = vmatprep.subr.mxu0 0.0
        %1434 = vmatpush2.msra.mxu0 0.0
        %1435 = vmatprep.subr.mxu0 0.0
        %1436 = vmatpush2.msra.mxu0 0.0
        %1437 = vmatprep.subr.mxu0 0.0
        %1438 = vmatpush2.msra.mxu0 0.0
        %1439 = vmatprep.subr.mxu0 0.0
        %1440 = vmatpush2.msra.mxu0 0.0
        %1441 = vmatprep.subr.mxu0 0.0
        %1442 = vmatpush2.msra.mxu0 0.0
        %1443 = vmatprep.subr.mxu0 0.0
        %1444 = vmatpush2.msra.mxu0 0.0
        %1445 = vmatprep.subr.mxu0 0.0
        %1446 = vmatpush2.msra.mxu0 0.0
        %1447 = vmatprep.subr.mxu0 0.0
        %1448 = vmatpush2.msra.mxu0 0.0
        %1449 = vmatprep.mubr.f32.mxu0 0.0
        %1450 = vmatmul.mubr.f32.gmra.mxu0 %v1012
        %v1451 = vpop.f32.mrf.mxu0
        %v1452 = vadd.f32 0.0, %v1451
        %v1453 = vpop.f32.mrf.mxu0
        %1454 = vmatprep.mubr.f32.mxu0 0.0
        %1455 = vmatmul.mubr.f32.gmra.mxu0 %v1016
        %v1456 = vpop.f32.mrf.mxu0
        %v1457 = vadd.f32 0.0, %v1456
        %v1458 = vpop.f32.mrf.mxu0
        %1459 = vmatprep.mubr.f32.mxu0 0.0
        %1460 = vmatmul.mubr.f32.gmra.mxu0 %v1020
        %v1461 = vpop.f32.mrf.mxu0
        %v1462 = vadd.f32 0.0, %v1461
        %v1463 = vpop.f32.mrf.mxu0
        %1464 = vmatprep.mubr.f32.mxu0 0.0
        %1465 = vmatmul.mubr.f32.gmra.mxu0 %v1024
        %v1466 = vpop.f32.mrf.mxu0
        %v1467 = vadd.f32 0.0, %v1466
        %v1468 = vpop.f32.mrf.mxu0
        %1469 = vdwg.mxu0
        %v1470 = vadd.f32 %v1133, %v1452
        %v1471 = vadd.f32 %v1139, %v1457
        %v1472 = vadd.f32 %v1145, %v1462
        %v1473 = vadd.f32 %v1151, %v1467
        %v1474 = vxor.u32 %v1470, 2147483648
        %v1475 = vxor.u32 %v1471, 2147483648
        %v1476 = vxor.u32 %v1472, 2147483648
        %v1477 = vxor.u32 %v1473, 2147483648
        %v1478 = vmul.f32 %v1474, 1.442695
        %v1479 = vpow.pop %v1478
        %v1480 = vmul.f32 %v1475, 1.442695
        %v1481 = vpow.pop %v1480
        %v1482 = vmul.f32 %v1476, 1.442695
        %v1483 = vpow.pop %v1482
        %v1484 = vmul.f32 %v1477, 1.442695
        %v1485 = vpow.pop %v1484
        %v1486 = vadd.f32 %v1479, 1.0
        %v1487 = vadd.f32 %v1481, 1.0
        %v1488 = vadd.f32 %v1483, 1.0
        %v1489 = vadd.f32 %v1485, 1.0
        %v1490 = vrcp.pop %v1486
        %v1491 = vmul.f32 1.0, %v1490
        %v1492 = vrcp.pop %v1487
        %v1493 = vmul.f32 1.0, %v1492
        %v1494 = vrcp.pop %v1488
        %v1495 = vmul.f32 1.0, %v1494
        %v1496 = vrcp.pop %v1489
        %v1497 = vmul.f32 1.0, %v1496
        %v1498 = vmul.f32 %v1362, %v1013
        %v1499 = vmul.f32 %v1364, %v1017
        %v1500 = vmul.f32 %v1366, %v1021
        %v1501 = vmul.f32 %v1368, %v1025
        %v1502 = vld [vmem:[%s8] sm:$0xff]
        %v1503 = vld [vmem:[%s8 + $0x8] sm:$0xff]
        %v1504 = vld [vmem:[%s8 + $0x10] sm:$0xff]
        %v1505 = vld [vmem:[%s8 + $0x18] sm:$0xff]
        %v1506 = vld [vmem:[%s8 + $0x20] sm:$0xff]
        %v1507 = vld [vmem:[%s8 + $0x28] sm:$0xff]
        %v1508 = vld [vmem:[%s8 + $0x30] sm:$0xff]
        %v1509 = vld [vmem:[%s8 + $0x38] sm:$0xff]
        %v1510 = vld [vmem:[%s8 + $0x40] sm:$0xff]
        %v1511 = vld [vmem:[%s8 + $0x48] sm:$0xff]
        %v1512 = vld [vmem:[%s8 + $0x50] sm:$0xff]
        %v1513 = vld [vmem:[%s8 + $0x58] sm:$0xff]
        %v1514 = vld [vmem:[%s8 + $0x60] sm:$0xff]
        %v1515 = vld [vmem:[%s8 + $0x68] sm:$0xff]
        %v1516 = vld [vmem:[%s8 + $0x70] sm:$0xff]
        %v1517 = vld [vmem:[%s8 + $0x78] sm:$0xff]
        %1518 = vmatprep.subr.mxu0 0.0
        %1519 = vmatpush1.msra.mxu0 %v1517
        %1520 = vmatprep.subr.mxu0 0.0
        %1521 = vmatpush1.msra.mxu0 %v1516
        %1522 = vmatprep.subr.mxu0 0.0
        %1523 = vmatpush1.msra.mxu0 %v1515
        %1524 = vmatprep.subr.mxu0 0.0
        %1525 = vmatpush1.msra.mxu0 %v1514
        %1526 = vmatprep.subr.mxu0 0.0
        %1527 = vmatpush1.msra.mxu0 %v1513
        %1528 = vmatprep.subr.mxu0 0.0
        %1529 = vmatpush1.msra.mxu0 %v1512
        %1530 = vmatprep.subr.mxu0 0.0
        %1531 = vmatpush1.msra.mxu0 %v1511
        %1532 = vmatprep.subr.mxu0 0.0
        %1533 = vmatpush1.msra.mxu0 %v1510
        %1534 = vmatprep.subr.mxu0 0.0
        %1535 = vmatpush1.msra.mxu0 %v1509
        %1536 = vmatprep.subr.mxu0 0.0
        %1537 = vmatpush1.msra.mxu0 %v1508
        %1538 = vmatprep.subr.mxu0 0.0
        %1539 = vmatpush1.msra.mxu0 %v1507
        %1540 = vmatprep.subr.mxu0 0.0
        %1541 = vmatpush1.msra.mxu0 %v1506
        %1542 = vmatprep.subr.mxu0 0.0
        %1543 = vmatpush1.msra.mxu0 %v1505
        %1544 = vmatprep.subr.mxu0 0.0
        %1545 = vmatpush1.msra.mxu0 %v1504
        %1546 = vmatprep.subr.mxu0 0.0
        %1547 = vmatpush1.msra.mxu0 %v1503
        %1548 = vmatprep.subr.mxu0 0.0
        %1549 = vmatpush1.msra.mxu0 %v1502
        %1550 = vmatprep.subr.mxu0 0.0
        %1551 = vmatpush2.msra.mxu0 0.0
        %1552 = vmatprep.subr.mxu0 0.0
        %1553 = vmatpush2.msra.mxu0 0.0
        %1554 = vmatprep.subr.mxu0 0.0
        %1555 = vmatpush2.msra.mxu0 0.0
        %1556 = vmatprep.subr.mxu0 0.0
        %1557 = vmatpush2.msra.mxu0 0.0
        %1558 = vmatprep.subr.mxu0 0.0
        %1559 = vmatpush2.msra.mxu0 0.0
        %1560 = vmatprep.subr.mxu0 0.0
        %1561 = vmatpush2.msra.mxu0 0.0
        %1562 = vmatprep.subr.mxu0 0.0
        %1563 = vmatpush2.msra.mxu0 0.0
        %1564 = vmatprep.subr.mxu0 0.0
        %1565 = vmatpush2.msra.mxu0 0.0
        %1566 = vmatprep.subr.mxu0 0.0
        %1567 = vmatpush2.msra.mxu0 0.0
        %1568 = vmatprep.subr.mxu0 0.0
        %1569 = vmatpush2.msra.mxu0 0.0
        %1570 = vmatprep.subr.mxu0 0.0
        %1571 = vmatpush2.msra.mxu0 0.0
        %1572 = vmatprep.subr.mxu0 0.0
        %1573 = vmatpush2.msra.mxu0 0.0
        %1574 = vmatprep.subr.mxu0 0.0
        %1575 = vmatpush2.msra.mxu0 0.0
        %1576 = vmatprep.subr.mxu0 0.0
        %1577 = vmatpush2.msra.mxu0 0.0
        %1578 = vmatprep.subr.mxu0 0.0
        %1579 = vmatpush2.msra.mxu0 0.0
        %1580 = vmatprep.subr.mxu0 0.0
        %1581 = vmatpush2.msra.mxu0 0.0
        %1582 = vmatprep.mubr.f32.mxu0 0.0
        %1583 = vmatmul.mubr.f32.gmra.mxu0 %v1498
        %v1584 = vpop.f32.mrf.mxu0
        %v1585 = vadd.f32 0.0, %v1584
        %v1586 = vpop.f32.mrf.mxu0
        %1587 = vmatprep.mubr.f32.mxu0 0.0
        %1588 = vmatmul.mubr.f32.gmra.mxu0 %v1499
        %v1589 = vpop.f32.mrf.mxu0
        %v1590 = vadd.f32 0.0, %v1589
        %v1591 = vpop.f32.mrf.mxu0
        %1592 = vmatprep.mubr.f32.mxu0 0.0
        %1593 = vmatmul.mubr.f32.gmra.mxu0 %v1500
        %v1594 = vpop.f32.mrf.mxu0
        %v1595 = vadd.f32 0.0, %v1594
        %v1596 = vpop.f32.mrf.mxu0
        %1597 = vmatprep.mubr.f32.mxu0 0.0
        %1598 = vmatmul.mubr.f32.gmra.mxu0 %v1501
        %v1599 = vpop.f32.mrf.mxu0
        %v1600 = vadd.f32 0.0, %v1599
        %v1601 = vpop.f32.mrf.mxu0
        %1602 = vdwg.mxu0
        %v1603 = vadd.f32 %v1135, %v1585
        %v1604 = vadd.f32 %v1141, %v1590
        %v1605 = vadd.f32 %v1147, %v1595
        %v1606 = vadd.f32 %v1153, %v1600
        %v1607 = vtanh.pop %v1603
        %v1608 = vtanh.pop %v1604
        %v1609 = vtanh.pop %v1605
        %v1610 = vtanh.pop %v1606
        %v1611 = vld [vmem:[%s9] sm:$0xff]
        %v1612 = vld [vmem:[%s9 + $0x8] sm:$0xff]
        %v1613 = vld [vmem:[%s9 + $0x10] sm:$0xff]
        %v1614 = vld [vmem:[%s9 + $0x18] sm:$0xff]
        %v1615 = vld [vmem:[%s9 + $0x20] sm:$0xff]
        %v1616 = vld [vmem:[%s9 + $0x28] sm:$0xff]
        %v1617 = vld [vmem:[%s9 + $0x30] sm:$0xff]
        %v1618 = vld [vmem:[%s9 + $0x38] sm:$0xff]
        %v1619 = vld [vmem:[%s9 + $0x40] sm:$0xff]
        %v1620 = vld [vmem:[%s9 + $0x48] sm:$0xff]
        %v1621 = vld [vmem:[%s9 + $0x50] sm:$0xff]
        %v1622 = vld [vmem:[%s9 + $0x58] sm:$0xff]
        %v1623 = vld [vmem:[%s9 + $0x60] sm:$0xff]
        %v1624 = vld [vmem:[%s9 + $0x68] sm:$0xff]
        %v1625 = vld [vmem:[%s9 + $0x70] sm:$0xff]
        %v1626 = vld [vmem:[%s9 + $0x78] sm:$0xff]
        %v1627 = vld [vmem:[%s10] sm:$0x1]
        %v1629 = vlaneseq
        %v1630 = vshrl.u32 %v1629, 7
        %v1631 = vsub.s32 0, %v1630
        %v1632 = vrot.slane %v1627, %v1631
        %1634 = vmatprep.subr.mxu0 0.0
        %1635 = vmatpush1.msra.mxu0 %v1626
        %1636 = vmatprep.subr.mxu0 0.0
        %1637 = vmatpush1.msra.mxu0 %v1625
        %1638 = vmatprep.subr.mxu0 0.0
        %1639 = vmatpush1.msra.mxu0 %v1624
        %1640 = vmatprep.subr.mxu0 0.0
        %1641 = vmatpush1.msra.mxu0 %v1623
        %1642 = vmatprep.subr.mxu0 0.0
        %1643 = vmatpush1.msra.mxu0 %v1622
        %1644 = vmatprep.subr.mxu0 0.0
        %1645 = vmatpush1.msra.mxu0 %v1621
        %1646 = vmatprep.subr.mxu0 0.0
        %1647 = vmatpush1.msra.mxu0 %v1620
        %1648 = vmatprep.subr.mxu0 0.0
        %1649 = vmatpush1.msra.mxu0 %v1619
        %1650 = vmatprep.subr.mxu0 0.0
        %1651 = vmatpush1.msra.mxu0 %v1618
        %1652 = vmatprep.subr.mxu0 0.0
        %1653 = vmatpush1.msra.mxu0 %v1617
        %1654 = vmatprep.subr.mxu0 0.0
        %1655 = vmatpush1.msra.mxu0 %v1616
        %1656 = vmatprep.subr.mxu0 0.0
        %1657 = vmatpush1.msra.mxu0 %v1615
        %1658 = vmatprep.subr.mxu0 0.0
        %1659 = vmatpush1.msra.mxu0 %v1614
        %1660 = vmatprep.subr.mxu0 0.0
        %1661 = vmatpush1.msra.mxu0 %v1613
        %1662 = vmatprep.subr.mxu0 0.0
        %1663 = vmatpush1.msra.mxu0 %v1612
        %1664 = vmatprep.subr.mxu0 0.0
        %1665 = vmatpush1.msra.mxu0 %v1611
        %1666 = vmatprep.subr.mxu0 0.0
        %1667 = vmatpush2.msra.mxu0 0.0
        %1668 = vmatprep.subr.mxu0 0.0
        %1669 = vmatpush2.msra.mxu0 0.0
        %1670 = vmatprep.subr.mxu0 0.0
        %1671 = vmatpush2.msra.mxu0 0.0
        %1672 = vmatprep.subr.mxu0 0.0
        %1673 = vmatpush2.msra.mxu0 0.0
        %1674 = vmatprep.subr.mxu0 0.0
        %1675 = vmatpush2.msra.mxu0 0.0
        %1676 = vmatprep.subr.mxu0 0.0
        %1677 = vmatpush2.msra.mxu0 0.0
        %1678 = vmatprep.subr.mxu0 0.0
        %1679 = vmatpush2.msra.mxu0 0.0
        %1680 = vmatprep.subr.mxu0 0.0
        %1681 = vmatpush2.msra.mxu0 0.0
        %1682 = vmatprep.subr.mxu0 0.0
        %1683 = vmatpush2.msra.mxu0 0.0
        %1684 = vmatprep.subr.mxu0 0.0
        %1685 = vmatpush2.msra.mxu0 0.0
        %1686 = vmatprep.subr.mxu0 0.0
        %1687 = vmatpush2.msra.mxu0 0.0
        %1688 = vmatprep.subr.mxu0 0.0
        %1689 = vmatpush2.msra.mxu0 0.0
        %1690 = vmatprep.subr.mxu0 0.0
        %1691 = vmatpush2.msra.mxu0 0.0
        %1692 = vmatprep.subr.mxu0 0.0
        %1693 = vmatpush2.msra.mxu0 0.0
        %1694 = vmatprep.subr.mxu0 0.0
        %1695 = vmatpush2.msra.mxu0 0.0
        %1696 = vmatprep.subr.mxu0 0.0
        %1697 = vmatpush2.msra.mxu0 0.0
        %1698 = vmatprep.mubr.f32.mxu0 0.0
        %1699 = vmatmul.mubr.f32.gmra.mxu0 %v1014
        %v1700 = vpop.f32.mrf.mxu0
        %v1701 = vadd.f32 %v1632, %v1700
        %v1702 = vpop.f32.mrf.mxu0
        %1703 = vmatprep.mubr.f32.mxu0 0.0
        %1704 = vmatmul.mubr.f32.gmra.mxu0 %v1018
        %v1705 = vpop.f32.mrf.mxu0
        %v1706 = vadd.f32 %v1632, %v1705
        %v1707 = vpop.f32.mrf.mxu0
        %1708 = vmatprep.mubr.f32.mxu0 0.0
        %1709 = vmatmul.mubr.f32.gmra.mxu0 %v1022
        %v1710 = vpop.f32.mrf.mxu0
        %v1711 = vadd.f32 %v1632, %v1710
        %v1712 = vpop.f32.mrf.mxu0
        %1713 = vmatprep.mubr.f32.mxu0 0.0
        %1714 = vmatmul.mubr.f32.gmra.mxu0 %v1026
        %v1715 = vpop.f32.mrf.mxu0
        %v1716 = vadd.f32 %v1632, %v1715
        %v1717 = vpop.f32.mrf.mxu0
        %1718 = vdwg.mxu0
        %v1719 = vsub.f32 1.0, %v1491
        %v1720 = vsub.f32 1.0, %v1493
        %v1721 = vsub.f32 1.0, %v1495
        %v1722 = vsub.f32 1.0, %v1497
        %v1723 = vmul.f32 %v1719, %v1607
        %v1724 = vmul.f32 %v1720, %v1608
        %v1725 = vmul.f32 %v1721, %v1609
        %v1726 = vmul.f32 %v1722, %v1610
        %v1727 = vmul.f32 %v1491, %v1701
        %v1728 = vmul.f32 %v1493, %v1706
        %v1729 = vmul.f32 %v1495, %v1711
        %v1730 = vmul.f32 %v1497, %v1716
        %v1731 = vadd.f32 %v1723, %v1727
        %v1732 = vadd.f32 %v1724, %v1728
        %v1733 = vadd.f32 %v1725, %v1729
        %v1734 = vadd.f32 %v1726, %v1730
        %1735 = vst [vmem:[%s426] sm:$0xff] %v1731
        %1736 = vst [vmem:[%s426 + $0x8] sm:$0xff] %v1732
        %1737 = vst [vmem:[%s426 + $0x10] sm:$0xff] %v1733
        %1738 = vst [vmem:[%s426 + $0x18] sm:$0xff] %v1734
      $region72: #{ggru_forward.1} parent=63 // pred_fallthru
        _
      %p1739 = scmp.lt.s32.totalorder %s26, 3
      %s1740 = scalar_select %p1739, %s26, 3
      %s1741 = smul.addr %s1740, 4
      %s1742 = smul.addr %s1741, 8
      %s1743 = scalar_lea.vmem %s11, %s1742
      // Predicated region
      $region73: #{ggru_forward.1} parent=63 // pred_check
        %p1744 = pneg %p295
      $region74: #{ggru_forward.1} parent=63 // pred_check_branch
        %1746 = sbr.rel (%p1744) target = $region76
      $region75: #{ggru_forward.1} parent=63 // pred_region
        _
      $region76: #{ggru_forward.1} parent=63 // pred_fallthru
        _
    $region64: #{ggru_forward.1} parent=5 // pred_fallthru
      _
    %p1747 = scmp.le.s32.totalorder 2, %s17
    // Predicated region
    $region77: #{ggru_forward.1} parent=5 // pred_check
      %p1748 = pneg %p1747
    $region78: #{ggru_forward.1} parent=5 // pred_check_branch
      %1750 = sbr.rel (%p1748) target = $region80
    $region79: #{ggru_forward.1} parent=5 // pred_region
      %s1751 = ssub.s32 %s17, 2
      // Predicated region
      $region81: #{ggru_forward.1} parent=79 // pred_check
        %p1752 = pneg %p301
      $region82: #{ggru_forward.1} parent=79 // pred_check_branch
        %1754 = sbr.rel (%p1752) target = $region84
      $region83: #{ggru_forward.1} parent=79 // pred_region
        %p1755 = scmp.lt.s32.totalorder %s28, 3
        %s1756 = scalar_select %p1755, %s28, 3
        %s1757 = smul.addr %s1756, 4
        %s1758 = smul.addr %s1757, 8
        %s1759 = scalar_lea.vmem %s11, %s1758
      $region84: #{ggru_forward.1} parent=79 // pred_fallthru
        _
    $region80: #{ggru_forward.1} parent=5 // pred_fallthru
      _
  $region6: #{ggru_forward.1} parent=0 // loop_footer
    %s21 = sadd.s32 1, %s17
  $region7: #{ggru_forward.1} parent=0 // loop_footer_branch
    %16 = sbr.rel target = $region3
  $region8: #{ggru_forward.1} parent=0 // loop_exit
    _

</llo_original>
